<compile_context>
chip_gen: v6e
topology: v6e:2x2x1
jax: 0.10.0
libtpu: 0.0.40
codegen_flags: <defaults>
</compile_context>

<pallas_src>
import math
import time

import numpy as np
import jax
import jax.numpy as jnp
from jax.experimental import pallas as pl
from jax.experimental.pallas import tpu as pltpu

# ----------------------------- configuration --------------------------------
LBASE = 1.25          # args.embed  (positional-encoding log base)
LFREQ = 8             # args.lfreq  -> embed_length = 2 * LFREQ = 16
FC_H, FC_W = 2, 2     # args.fc_hw = '2_2'
FC_DIM = 16           # args.fc_dim
CH_T = 16             # args.ch_t
DEC_STRDS = (2, 2)    # args.dec_strds
DEC_BLKS = (1, 1)     # args.dec_blks
REDUCE = 2            # args.reduce
LOWER_WIDTH = 6       # args.lower_width
KS_DEC1, KS_DEC2 = 1, 5   # from args.ks = '0_1_5'
EXPANSION = 1
EMBED_LEN = 2 * LFREQ
# args.act='gelu', args.norm='none', conv_type[1]='pshuffle', out_bias='tanh'

HEAD_N = 128          # lane-dense (padded) width of the head output slab
MIN_ROWS = 16         # pad every MXU LHS to >=16 rows (full bf16 sublane tile)


# ------------------------------ geometry -------------------------------------
def derive_geometry():
    """Replicates the torch constructor's layer bookkeeping."""
    blocks = []
    ngf = FC_DIM
    h, w = FC_H, FC_W
    for i, strd in enumerate(DEC_STRDS):
        if i == 0:
            new_ngf = int(ngf * EXPANSION)
        else:
            new_ngf = int(max(ngf // (1 if strd == 1 else REDUCE), LOWER_WIDTH))
        for j in range(DEC_BLKS[i]):
            ks = min(KS_DEC1 + 2 * i, KS_DEC2)
            r = 1 if j else strd
            blocks.append(dict(ks=ks, r=r, h=h, w=w, cin=ngf, cout=new_ngf))
            h, w = h * r, w * r
            ngf = new_ngf
    head = dict(h=h, w=w, cin=ngf, cout=3)
    return dict(fc=(FC_H, FC_W, FC_DIM), blocks=blocks, head=head)


def _pre_width(blk):
    """Lane width of a block's pre-shuffle activation row: r * W_out * C_out."""
    return blk["r"] * (blk["w"] * blk["r"]) * blk["cout"]


# ----------------------------- fused Pallas kernel ---------------------------
def _make_decoder_kernel(geom):
    # TODO(synk): the fused kernel assumes the 2-block / r=2 decoder implied by
    # the given args; other dec_strds/dec_blks configs would need a generic body.
    assert len(geom["blocks"]) == 2
    blk1, blk2 = geom["blocks"]
    assert blk1["r"] == 2 and blk2["r"] == 2 and blk1["ks"] == 1

    n1 = _pre_width(blk1)                    # 128
    n2 = _pre_width(blk2)                    # 128
    w1c = blk1["w"] * blk1["cin"]            # 32  (block-1 input row lanes)
    w2c = blk2["w"] * blk2["cin"]            # 64  (block-2 input row lanes)
    chunk1 = n1 // blk1["r"]                 # 64  (lanes per shuffled row, blk1)
    chunk2 = n2 // blk2["r"]                 # 64  (lanes per shuffled row, blk2)
    ks2 = blk2["ks"]
    pad2 = ks2 // 2
    head_h = blk2["h"] * blk2["r"]           # 8

    def kernel(te_ref,
               ws1, bs1, ws2, bs2,           # stem MLP
               wt1, bt1, wt2, bt2,           # stem_t MLP
               wsft, bsft,                   # merged SFT scale/shift (both blocks)
               w1, b1,                       # block-1 expanded conv
               w2, b2,                       # block-2 expanded conv
               wh, bh,                       # head expanded 1x1 conv
               z1_ref, z2_ref, img_ref):
        f32, bf16 = jnp.float32, jnp.bfloat16

        def mm(x, w_ref, b_ref):
            # MXU matmul in bf16 with f32 accumulation, fused bias add.
            return jnp.dot(x.astype(bf16), w_ref[...],
                           preferred_element_type=f32) + b_ref[...]

        def act(v):
            # TODO(synk): torch nn.GELU defaults to the exact erf form; the
            # tanh approximation is used here (and in the reference check).
            return jax.nn.gelu(v, approximate=True)

        def pad_rows(x, rows=MIN_ROWS):
            n = x.shape[0]
            if n >= rows:
                return x
            return jnp.concatenate(
                [x, jnp.zeros((rows - n, x.shape[1]), x.dtype)], axis=0)

        # ---- time embedding (row 0 real, remaining rows are zero filler) ----
        t8 = pad_rows(te_ref[0])                        # (16, EMBED_LEN)

        # ---- stem MLP -> 2x2xFC_DIM feature; lanes ordered (h, w, c) --------
        h = act(mm(t8, ws1, bs1))                       # (16, 256)
        h = act(mm(h, ws2, bs2))                        # (16, 64)

        # ---- stem_t MLP -> per-frame modulation code te ---------------------
        te = act(mm(t8, wt1, bt1))                      # (16, 2*CH_T)
        te = act(mm(te, wt2, bt2))                      # (16, CH_T)

        # ---- merged SFT heads of both blocks (pre-tiled to lane layout) -----
        st = mm(te, wsft, bsft)                         # (16, 2*n1 + 2*n2)
        s1 = st[0:1, 0:n1]
        t1 = st[0:1, n1:2 * n1]
        s2 = st[0:1, 2 * n1:2 * n1 + n2]
        t2 = st[0:1, 2 * n1 + n2:2 * n1 + 2 * n2]

        # ---- block 1: 1x1 conv (block-diag over W) + SFT + GELU -------------
        x1 = pad_rows(jnp.concatenate(
            [h[0:1, hh * w1c:(hh + 1) * w1c] for hh in range(blk1["h"])],
            axis=0))                                    # (16, 32), rows 0..1 real
        y1 = mm(x1, w1, b1)                             # (16, 128), lanes (i, w_out, c)
        z1 = act(y1 * s1 + t1)
        z1_ref[0] = z1[0:blk1["h"]]                     # (2, 128) lane-dense

        # pixel shuffle r=2: output row h*2+i <- z1[h, i*chunk1:(i+1)*chunk1]
        x2 = jnp.concatenate(
            [z1[hh:hh + 1, ii * chunk1:(ii + 1) * chunk1]
             for hh in range(blk1["h"]) for ii in range(blk1["r"])],
            axis=0)                                     # (4, 64) = (H2, W2*C2)

        # ---- block 2: ks x ks conv via zero-padded canvas + tap concat ------
        zlane = jnp.zeros((blk2["h"], pad2 * blk2["cin"]), f32)
        xp = jnp.concatenate([zlane, x2, zlane], axis=1)        # (4, 96)
        zrow = jnp.zeros((pad2, xp.shape[1]), f32)
        canvas = jnp.concatenate([zrow, xp, zrow], axis=0)      # (6, 96)
        taps = jnp.concatenate(
            [canvas[dh:dh + blk2["h"],
                    dw * blk2["cin"]:dw * blk2["cin"] + w2c]
             for dh in range(ks2) for dw in range(ks2)],
            axis=1)                                     # (4, ks2*ks2*64) = (4, 576)
        y2 = mm(pad_rows(taps), w2, b2)                 # (16, 128), rows 0..3 real
        z2 = act(y2 * s2 + t2)
        z2_ref[0] = z2[0:blk2["h"]]                     # (4, 128) lane-dense

        # pixel shuffle r=2 -> head input (H3, W3*C3) = (8, 64)
        x3 = pad_rows(jnp.concatenate(
            [z2[hh:hh + 1, ii * chunk2:(ii + 1) * chunk2]
             for hh in range(blk2["h"]) for ii in range(blk2["r"])],
            axis=0))                                    # (16, 64)

        # ---- head: 1x1 conv (block-diag over W) + tanh output bias ----------
        yh = mm(x3, wh, bh)                             # (16, 128); first 24 lanes real
        img_ref[0] = jnp.tanh(yh[0:head_h]) * 0.5 + 0.5  # (8, 128) lane-dense

    return kernel


# ------------------------------ JAX wrapper -----------------------------------
def position_encoding(t):
    # t: (B, 1) -> (B, 2*LFREQ) : [sin(pi*b^i*t) .. cos(pi*b^i*t)]
    bases = (LBASE ** jnp.arange(LFREQ, dtype=jnp.float32)) * math.pi
    v = t * bases[None, :]
    return jnp.concatenate([jnp.sin(v), jnp.cos(v)], axis=-1)


def build_forward(geom):
    blk1, blk2 = geom["blocks"]
    head = geom["head"]
    n1, n2 = _pre_width(blk1), _pre_width(blk2)
    kernel = _make_decoder_kernel(geom)

    def run_decoder(t_embed, weights):
        b = t_embed.shape[0]
        te3 = t_embed.reshape(b, 1, EMBED_LEN)
        # Per-frame time embedding is the only grid-varying input; all weight
        # tensors use a constant index_map so they stay VMEM-resident.
        in_specs = [pl.BlockSpec((1, 1, EMBED_LEN), lambda i: (i, 0, 0))]
        in_specs += [pl.BlockSpec(w.shape, lambda i: (0, 0)) for w in weights]
        out_shape = (
            jax.ShapeDtypeStruct((b, blk1["h"], n1), jnp.float32),
            jax.ShapeDtypeStruct((b, blk2["h"], n2), jnp.float32),
            jax.ShapeDtypeStruct((b, head["h"], HEAD_N), jnp.float32),
        )
        out_specs = (
            pl.BlockSpec((1, blk1["h"], n1), lambda i: (i, 0, 0)),
            pl.BlockSpec((1, blk2["h"], n2), lambda i: (i, 0, 0)),
            pl.BlockSpec((1, head["h"], HEAD_N), lambda i: (i, 0, 0)),
        )
        return pl.pallas_call(
            kernel,
            grid=(b,),
            in_specs=in_specs,
            out_specs=out_specs,
            out_shape=out_shape,
            compiler_params=pltpu.CompilerParams(
                dimension_semantics=("parallel",)),
        )(te3, *weights)

    @jax.jit
    def forward(weights, frame_t):
        t = frame_t[:, None].astype(jnp.float32)
        t_embed = position_encoding(t)
        b = frame_t.shape[0]
        z1, z2, yh = run_decoder(t_embed, weights)

        # un-fold the lane-dense kernel outputs into torch NCHW tensors
        r1, w1o, c1 = blk1["r"], blk1["w"] * blk1["r"], blk1["cout"]
        out1 = (z1.reshape(b, blk1["h"], r1, w1o, c1)
                  .transpose(0, 4, 1, 2, 3)
                  .reshape(b, c1, blk1["h"] * r1, w1o))
        r2, w2o, c2 = blk2["r"], blk2["w"] * blk2["r"], blk2["cout"]
        out2 = (z2.reshape(b, blk2["h"], r2, w2o, c2)
                  .transpose(0, 4, 1, 2, 3)
                  .reshape(b, c2, blk2["h"] * r2, w2o))
        img = (yh[:, :, :head["cout"] * head["w"]]
               .reshape(b, head["h"], head["cout"], head["w"])
               .transpose(0, 2, 1, 3))
        return img, [out1, out2]

    return forward


def nerv_boost_forward(forward_fn, weights, frame_t):
    """Mirrors NeRV_Boost.forward: returns (img_out, out_list, dec_time)."""
    start = time.perf_counter()
    img, outs = forward_fn(weights, frame_t)
    jax.block_until_ready((img, outs))
    return img, outs, time.perf_counter() - start


# --------------------------- parameter creation ------------------------------
def init_params(key):
    def split():
        nonlocal key
        key, sub = jax.random.split(key)
        return sub

    def linear(din, dout):
        w = jax.random.normal(split(), (din, dout), jnp.float32) / math.sqrt(din)
        b = jax.random.normal(split(), (dout,), jnp.float32) * 0.01
        return w, b

    geom = derive_geometry()
    params = {}
    params["stem"] = [linear(EMBED_LEN, 256),
                      linear(256, FC_H * FC_W * FC_DIM)]
    params["stem_t"] = [linear(EMBED_LEN, CH_T * 2),
                        linear(CH_T * 2, CH_T)]
    blocks = []
    for blk in geom["blocks"]:
        ks, r, cin, cout = blk["ks"], blk["r"], blk["cin"], blk["cout"]
        fan = ks * ks * cin
        conv_w = jax.random.normal(split(), (ks, ks, cin, cout * r * r),
                                   jnp.float32) / math.sqrt(fan)
        conv_b = jax.random.normal(split(), (cout * r * r,), jnp.float32) * 0.01
        # TODO(synk): exact Boost-NeRV SFT head (small MLP vs single linear)
        # not specified; one linear each for scale/shift, identically in the
        # reference and the fused kernel.
        ssw, ssb = linear(CH_T, cout)
        stw, stb = linear(CH_T, cout)
        blocks.append(dict(ks=ks, strd=r, conv_w=conv_w, conv_b=conv_b,
                           sft_scale_w=ssw, sft_scale_b=ssb,
                           sft_shift_w=stw, sft_shift_b=stb))
    params["blocks"] = blocks
    params["head_w"], params["head_b"] = linear(geom["head"]["cin"], 3)
    return params, geom


def pack_params(par, geom):
    """Expand the canonical parameters into the fused-kernel lane layout."""
    blk1, blk2 = geom["blocks"]
    head = geom["head"]
    fc_h, fc_w, fc_dim = geom["fc"]
    f32 = np.float32
    as_np = lambda x: np.asarray(x, f32)

    def expand_conv(blk, conv_w, conv_b):
        ks, r = blk["ks"], blk["r"]
        w_in, cin, cout = blk["w"], blk["cin"], blk["cout"]
        w_out = w_in * r
        k_tap = w_in * cin
        n = r * w_out * cout
        wb = np.zeros((ks * ks * k_tap, n), f32)
        bb = np.zeros((n,), f32)
        cw, cb = as_np(conv_w), as_np(conv_b)
        for dh in range(ks):
            for dw in range(ks):
                tap = dh * ks + dw
                for w in range(w_in):
                    for ci in range(cin):
                        k = tap * k_tap + w * cin + ci
                        for c in range(cout):
                            for i in range(r):
                                for j in range(r):
                                    col = i * (w_out * cout) + (w * r + j) * cout + c
                                    wb[k, col] = cw[dh, dw, ci, c * r * r + i * r + j]
        for c in range(cout):
            for i in range(r):
                for j in range(r):
                    for wo in range(w_out):
                        bb[i * (w_out * cout) + wo * cout + c] = cb[c * r * r + i * r + j]
        return wb, bb

    # stem layer 2: permute torch (c, h, w) column order -> (h, w, c)
    ws2, bs2 = par["stem"][1]
    ws2p = (as_np(ws2).reshape(-1, fc_dim, fc_h, fc_w)
            .transpose(0, 2, 3, 1).reshape(-1, fc_h * fc_w * fc_dim))
    bs2p = as_np(bs2).reshape(fc_dim, fc_h, fc_w).transpose(1, 2, 0).reshape(-1)

    # merged + lane-tiled SFT weights for both blocks
    b1p, b2p = par["blocks"]
    n1, n2 = _pre_width(blk1), _pre_width(blk2)
    rep1, rep2 = n1 // blk1["cout"], n2 // blk2["cout"]
    sft_w = np.concatenate(
        [np.tile(as_np(b1p["sft_scale_w"]), (1, rep1)),
         np.tile(as_np(b1p["sft_shift_w"]), (1, rep1)),
         np.tile(as_np(b2p["sft_scale_w"]), (1, rep2)),
         np.tile(as_np(b2p["sft_shift_w"]), (1, rep2))], axis=1)
    sft_b = np.concatenate(
        [np.tile(as_np(b1p["sft_scale_b"]), rep1),
         np.tile(as_np(b1p["sft_shift_b"]), rep1),
         np.tile(as_np(b2p["sft_scale_b"]), rep2),
         np.tile(as_np(b2p["sft_shift_b"]), rep2)])

    w1b, b1b = expand_conv(blk1, b1p["conv_w"], b1p["conv_b"])
    w2b, b2b = expand_conv(blk2, b2p["conv_w"], b2p["conv_b"])

    # head: block-diag over w; output lane = c*W + w, zero-padded to HEAD_N
    assert head["cout"] * head["w"] <= HEAD_N
    hw, hb = as_np(par["head_w"]), as_np(par["head_b"])
    whb = np.zeros((head["w"] * head["cin"], HEAD_N), f32)
    bhb = np.zeros((HEAD_N,), f32)
    for w in range(head["w"]):
        for ci in range(head["cin"]):
            for c in range(head["cout"]):
                whb[w * head["cin"] + ci, c * head["w"] + w] = hw[ci, c]
    for c in range(head["cout"]):
        for w in range(head["w"]):
            bhb[c * head["w"] + w] = hb[c]

    wmat = lambda x: jnp.asarray(np.asarray(x, f32), jnp.bfloat16)
    bias = lambda x: jnp.asarray(np.asarray(x, f32).reshape(1, -1), jnp.float32)

    ws1, bs1 = par["stem"][0]
    wt1, bt1 = par["stem_t"][0]
    wt2, bt2 = par["stem_t"][1]
    return [
        wmat(ws1), bias(bs1), wmat(ws2p), bias(bs2p),
        wmat(wt1), bias(bt1), wmat(wt2), bias(bt2),
        wmat(sft_w), bias(sft_b),
        wmat(w1b), bias(b1b), wmat(w2b), bias(b2b),
        wmat(whb), bias(bhb),
    ]


# ---------------------------- pure-JAX reference ------------------------------
def _bdot(a, b):
    return jnp.dot(a.astype(jnp.bfloat16), b.astype(jnp.bfloat16),
                   preferred_element_type=jnp.float32)


def pixel_shuffle_nhwc(x, r):
    b, h, w, c = x.shape
    cout = c // (r * r)
    x = x.reshape(b, h, w, cout, r, r)
    x = jnp.transpose(x, (0, 1, 4, 2, 5, 3))
    return x.reshape(b, h * r, w * r, cout)


def _ref_conv_nhwc(x, w_hwio, bias):
    ks = w_hwio.shape[0]
    p = ks // 2
    b, h, w, cin = x.shape
    xp = jnp.pad(x, ((0, 0), (p, p), (p, p), (0, 0)))
    cols = jnp.concatenate(
        [xp[:, dh:dh + h, dw:dw + w, :] for dh in range(ks) for dw in range(ks)],
        axis=-1)
    y = _bdot(cols.reshape(b * h * w, ks * ks * cin),
              w_hwio.reshape(ks * ks * cin, -1)) + bias
    return y.reshape(b, h, w, -1)


def ref_forward(par, frame_t):
    """Pure-JAX reference with torch NeRV_Boost semantics (NCHW outputs)."""
    gelu = lambda v: jax.nn.gelu(v, approximate=True)
    t = frame_t[:, None].astype(jnp.float32)
    t_embed = position_encoding(t)
    h = t_embed
    for (w, bb) in par["stem"]:
        h = gelu(_bdot(h, w) + bb)
    b = frame_t.shape[0]
    x = jnp.transpose(h.reshape(b, FC_DIM, FC_H, FC_W), (0, 2, 3, 1))   # NHWC
    te = t_embed
    for (w, bb) in par["stem_t"]:
        te = gelu(_bdot(te, w) + bb)
    outs = []
    for blk in par["blocks"]:
        y = _ref_conv_nhwc(x, blk["conv_w"], blk["conv_b"])
        y = pixel_shuffle_nhwc(y, blk["strd"])
        sc = _bdot(te, blk["sft_scale_w"]) + blk["sft_scale_b"]
        sh = _bdot(te, blk["sft_shift_w"]) + blk["sft_shift_b"]
        x = gelu(y * sc[:, None, None, :] + sh[:, None, None, :])
        outs.append(jnp.transpose(x, (0, 3, 1, 2)))
    bn, hh, ww, cc = x.shape
    yh = _bdot(x.reshape(-1, cc), par["head_w"]) + par["head_b"]
    img = jnp.tanh(yh) * 0.5 + 0.5
    img = jnp.transpose(img.reshape(bn, hh, ww, -1), (0, 3, 1, 2))
    return img, outs


# --------------------------------- main ---------------------------------------
if __name__ == "__main__":
    root = jax.random.PRNGKey(0)
    pkey, ikey = jax.random.split(root)
    params, geom = init_params(pkey)
    weights = pack_params(params, geom)
    forward = build_forward(geom)

    # forward input: B=2 normalized frame timestamps (torch: input[:, None].float())
    frame_t = jax.random.uniform(ikey, (2,), jnp.float32)

    # warm-up / compile
    img_out, out_list = forward(weights, frame_t)
    jax.block_until_ready((img_out, out_list))

    # timed run of the compiled decoder (torch-style dec_time)
    img_out, out_list, dec_time = nerv_boost_forward(forward, weights, frame_t)

    # fc 2x2 upsampled by strides (2, 2) -> 8x8 RGB output, NCHW
    assert img_out.shape == (2, 3, 8, 8), img_out.shape
    assert out_list[0].shape == (2, 16, 4, 4), out_list[0].shape
    assert out_list[1].shape == (2, 8, 8, 8), out_list[1].shape
    assert bool(jnp.all(jnp.isfinite(img_out)))

    # numerical check of the fused kernel against the pure-JAX reference
    img_ref, outs_ref = ref_forward(params, frame_t)
    assert bool(jnp.allclose(img_out, img_ref, rtol=2e-2, atol=2e-2))
    assert bool(jnp.allclose(out_list[0], outs_ref[0], rtol=2e-2, atol=2e-2))
    assert bool(jnp.allclose(out_list[1], outs_ref[1], rtol=2e-2, atol=2e-2))

    print("KERNEL_OK")
</pallas_src>

<mosaic_0001>
module attributes {stable_mosaic.version = 11 : i64} {
  func.func @kernel(%arg0: i32, %arg1: memref<1x1x16xf32, #tpu.memory_space<vmem>>, %arg2: memref<16x256xbf16, #tpu.memory_space<vmem>>, %arg3: memref<1x256xf32, #tpu.memory_space<vmem>>, %arg4: memref<256x64xbf16, #tpu.memory_space<vmem>>, %arg5: memref<1x64xf32, #tpu.memory_space<vmem>>, %arg6: memref<16x32xbf16, #tpu.memory_space<vmem>>, %arg7: memref<1x32xf32, #tpu.memory_space<vmem>>, %arg8: memref<32x16xbf16, #tpu.memory_space<vmem>>, %arg9: memref<1x16xf32, #tpu.memory_space<vmem>>, %arg10: memref<16x512xbf16, #tpu.memory_space<vmem>>, %arg11: memref<1x512xf32, #tpu.memory_space<vmem>>, %arg12: memref<32x128xbf16, #tpu.memory_space<vmem>>, %arg13: memref<1x128xf32, #tpu.memory_space<vmem>>, %arg14: memref<576x128xbf16, #tpu.memory_space<vmem>>, %arg15: memref<1x128xf32, #tpu.memory_space<vmem>>, %arg16: memref<64x128xbf16, #tpu.memory_space<vmem>>, %arg17: memref<1x128xf32, #tpu.memory_space<vmem>>, %arg18: memref<1x2x128xf32, #tpu.memory_space<vmem>>, %arg19: memref<1x4x128xf32, #tpu.memory_space<vmem>>, %arg20: memref<1x8x128xf32, #tpu.memory_space<vmem>>) attributes {dimension_semantics = [#tpu.dimension_semantics<parallel>], iteration_bounds = array<i64: 2>, scalar_prefetch = 0 : i64, scratch_operands = 0 : i64, tpu.core_type = #tpu.core_type<tc>, window_params = [{transform_indices = @transform_0, window_bounds = array<i64: 1, 1, 16>}, {pipeline_mode = #tpu.pipeline_mode<synchronous>, transform_indices = @transform_1, window_bounds = array<i64: 16, 256>}, {pipeline_mode = #tpu.pipeline_mode<synchronous>, transform_indices = @transform_2, window_bounds = array<i64: 1, 256>}, {pipeline_mode = #tpu.pipeline_mode<synchronous>, transform_indices = @transform_3, window_bounds = array<i64: 256, 64>}, {pipeline_mode = #tpu.pipeline_mode<synchronous>, transform_indices = @transform_4, window_bounds = array<i64: 1, 64>}, {pipeline_mode = #tpu.pipeline_mode<synchronous>, transform_indices = @transform_5, window_bounds = array<i64: 16, 32>}, {pipeline_mode = #tpu.pipeline_mode<synchronous>, transform_indices = @transform_6, window_bounds = array<i64: 1, 32>}, {pipeline_mode = #tpu.pipeline_mode<synchronous>, transform_indices = @transform_7, window_bounds = array<i64: 32, 16>}, {pipeline_mode = #tpu.pipeline_mode<synchronous>, transform_indices = @transform_8, window_bounds = array<i64: 1, 16>}, {pipeline_mode = #tpu.pipeline_mode<synchronous>, transform_indices = @transform_9, window_bounds = array<i64: 16, 512>}, {pipeline_mode = #tpu.pipeline_mode<synchronous>, transform_indices = @transform_10, window_bounds = array<i64: 1, 512>}, {pipeline_mode = #tpu.pipeline_mode<synchronous>, transform_indices = @transform_11, window_bounds = array<i64: 32, 128>}, {pipeline_mode = #tpu.pipeline_mode<synchronous>, transform_indices = @transform_12, window_bounds = array<i64: 1, 128>}, {pipeline_mode = #tpu.pipeline_mode<synchronous>, transform_indices = @transform_13, window_bounds = array<i64: 576, 128>}, {pipeline_mode = #tpu.pipeline_mode<synchronous>, transform_indices = @transform_14, window_bounds = array<i64: 1, 128>}, {pipeline_mode = #tpu.pipeline_mode<synchronous>, transform_indices = @transform_15, window_bounds = array<i64: 64, 128>}, {pipeline_mode = #tpu.pipeline_mode<synchronous>, transform_indices = @transform_16, window_bounds = array<i64: 1, 128>}, {transform_indices = @transform_17, window_bounds = array<i64: 1, 2, 128>}, {transform_indices = @transform_18, window_bounds = array<i64: 1, 4, 128>}, {transform_indices = @transform_19, window_bounds = array<i64: 1, 8, 128>}]} {
    %c0 = arith.constant 0 : index
    %c0_0 = arith.constant 0 : index
    %c0_1 = arith.constant 0 : index
    %0 = vector.load %arg1[%c0, %c0_0, %c0_1] : memref<1x1x16xf32, #tpu.memory_space<vmem>>, vector<1x1x16xf32>
    %1 = vector.shape_cast %0 : vector<1x1x16xf32> to vector<1x16xf32>
    %cst = arith.constant 0.000000e+00 : f32
    %2 = vector.broadcast %cst : f32 to vector<15x16xf32>
    %3 = tpu.concatenate %1, %2 in 0 : vector<1x16xf32>, vector<15x16xf32> -> vector<16x16xf32>
    %4 = arith.truncf %3 : vector<16x16xf32> to vector<16x16xbf16>
    %c0_2 = arith.constant 0 : index
    %c0_3 = arith.constant 0 : index
    %5 = vector.load %arg2[%c0_2, %c0_3] : memref<16x256xbf16, #tpu.memory_space<vmem>>, vector<16x256xbf16>
    %cst_4 = arith.constant dense<0.000000e+00> : vector<16x256xf32>
    %6 = tpu.matmul %4, %5, %cst_4 {dimension_numbers = #tpu.dot_dimension_numbers<[1], [0], [0], [1], [0, 0, 1, 1], [], []>} : vector<16x16xbf16>, vector<16x256xbf16>, vector<16x256xf32> -> vector<16x256xf32>
    %c0_5 = arith.constant 0 : index
    %c0_6 = arith.constant 0 : index
    %7 = vector.load %arg3[%c0_5, %c0_6] : memref<1x256xf32, #tpu.memory_space<vmem>>, vector<1x256xf32>
    %8 = vector.broadcast %7 : vector<1x256xf32> to vector<16x256xf32>
    %9 = arith.addf %6, %8 : vector<16x256xf32>
    %10 = arith.mulf %9, %9 : vector<16x256xf32>
    %11 = arith.mulf %9, %10 : vector<16x256xf32>
    %cst_7 = arith.constant 4.471500e-02 : f32
    %12 = vector.broadcast %cst_7 : f32 to vector<16x256xf32>
    %13 = arith.mulf %12, %11 : vector<16x256xf32>
    %14 = arith.addf %9, %13 : vector<16x256xf32>
    %cst_8 = arith.constant 0.797884583 : f32
    %15 = vector.broadcast %cst_8 : f32 to vector<16x256xf32>
    %16 = arith.mulf %15, %14 : vector<16x256xf32>
    %17 = math.tanh %16 : vector<16x256xf32>
    %cst_9 = arith.constant 1.000000e+00 : f32
    %18 = vector.broadcast %cst_9 : f32 to vector<16x256xf32>
    %19 = arith.addf %18, %17 : vector<16x256xf32>
    %cst_10 = arith.constant 5.000000e-01 : f32
    %20 = vector.broadcast %cst_10 : f32 to vector<16x256xf32>
    %21 = arith.mulf %20, %19 : vector<16x256xf32>
    %22 = arith.mulf %9, %21 : vector<16x256xf32>
    %23 = arith.truncf %22 : vector<16x256xf32> to vector<16x256xbf16>
    %c0_11 = arith.constant 0 : index
    %c0_12 = arith.constant 0 : index
    %24 = vector.load %arg4[%c0_11, %c0_12] : memref<256x64xbf16, #tpu.memory_space<vmem>>, vector<256x64xbf16>
    %cst_13 = arith.constant dense<0.000000e+00> : vector<16x64xf32>
    %25 = tpu.matmul %23, %24, %cst_13 {dimension_numbers = #tpu.dot_dimension_numbers<[1], [0], [0], [1], [0, 0, 1, 1], [], []>} : vector<16x256xbf16>, vector<256x64xbf16>, vector<16x64xf32> -> vector<16x64xf32>
    %c0_14 = arith.constant 0 : index
    %c0_15 = arith.constant 0 : index
    %26 = vector.load %arg5[%c0_14, %c0_15] : memref<1x64xf32, #tpu.memory_space<vmem>>, vector<1x64xf32>
    %27 = vector.broadcast %26 : vector<1x64xf32> to vector<16x64xf32>
    %28 = arith.addf %25, %27 : vector<16x64xf32>
    %29 = arith.mulf %28, %28 : vector<16x64xf32>
    %30 = arith.mulf %28, %29 : vector<16x64xf32>
    %cst_16 = arith.constant 4.471500e-02 : f32
    %31 = vector.broadcast %cst_16 : f32 to vector<16x64xf32>
    %32 = arith.mulf %31, %30 : vector<16x64xf32>
    %33 = arith.addf %28, %32 : vector<16x64xf32>
    %cst_17 = arith.constant 0.797884583 : f32
    %34 = vector.broadcast %cst_17 : f32 to vector<16x64xf32>
    %35 = arith.mulf %34, %33 : vector<16x64xf32>
    %36 = math.tanh %35 : vector<16x64xf32>
    %cst_18 = arith.constant 1.000000e+00 : f32
    %37 = vector.broadcast %cst_18 : f32 to vector<16x64xf32>
    %38 = arith.addf %37, %36 : vector<16x64xf32>
    %cst_19 = arith.constant 5.000000e-01 : f32
    %39 = vector.broadcast %cst_19 : f32 to vector<16x64xf32>
    %40 = arith.mulf %39, %38 : vector<16x64xf32>
    %41 = arith.mulf %28, %40 : vector<16x64xf32>
    %42 = arith.truncf %3 : vector<16x16xf32> to vector<16x16xbf16>
    %c0_20 = arith.constant 0 : index
    %c0_21 = arith.constant 0 : index
    %43 = vector.load %arg6[%c0_20, %c0_21] : memref<16x32xbf16, #tpu.memory_space<vmem>>, vector<16x32xbf16>
    %cst_22 = arith.constant dense<0.000000e+00> : vector<16x32xf32>
    %44 = tpu.matmul %42, %43, %cst_22 {dimension_numbers = #tpu.dot_dimension_numbers<[1], [0], [0], [1], [0, 0, 1, 1], [], []>} : vector<16x16xbf16>, vector<16x32xbf16>, vector<16x32xf32> -> vector<16x32xf32>
    %c0_23 = arith.constant 0 : index
    %c0_24 = arith.constant 0 : index
    %45 = vector.load %arg7[%c0_23, %c0_24] : memref<1x32xf32, #tpu.memory_space<vmem>>, vector<1x32xf32>
    %46 = vector.broadcast %45 : vector<1x32xf32> to vector<16x32xf32>
    %47 = arith.addf %44, %46 : vector<16x32xf32>
    %48 = arith.mulf %47, %47 : vector<16x32xf32>
    %49 = arith.mulf %47, %48 : vector<16x32xf32>
    %cst_25 = arith.constant 4.471500e-02 : f32
    %50 = vector.broadcast %cst_25 : f32 to vector<16x32xf32>
    %51 = arith.mulf %50, %49 : vector<16x32xf32>
    %52 = arith.addf %47, %51 : vector<16x32xf32>
    %cst_26 = arith.constant 0.797884583 : f32
    %53 = vector.broadcast %cst_26 : f32 to vector<16x32xf32>
    %54 = arith.mulf %53, %52 : vector<16x32xf32>
    %55 = math.tanh %54 : vector<16x32xf32>
    %cst_27 = arith.constant 1.000000e+00 : f32
    %56 = vector.broadcast %cst_27 : f32 to vector<16x32xf32>
    %57 = arith.addf %56, %55 : vector<16x32xf32>
    %cst_28 = arith.constant 5.000000e-01 : f32
    %58 = vector.broadcast %cst_28 : f32 to vector<16x32xf32>
    %59 = arith.mulf %58, %57 : vector<16x32xf32>
    %60 = arith.mulf %47, %59 : vector<16x32xf32>
    %61 = arith.truncf %60 : vector<16x32xf32> to vector<16x32xbf16>
    %c0_29 = arith.constant 0 : index
    %c0_30 = arith.constant 0 : index
    %62 = vector.load %arg8[%c0_29, %c0_30] : memref<32x16xbf16, #tpu.memory_space<vmem>>, vector<32x16xbf16>
    %cst_31 = arith.constant dense<0.000000e+00> : vector<16x16xf32>
    %63 = tpu.matmul %61, %62, %cst_31 {dimension_numbers = #tpu.dot_dimension_numbers<[1], [0], [0], [1], [0, 0, 1, 1], [], []>} : vector<16x32xbf16>, vector<32x16xbf16>, vector<16x16xf32> -> vector<16x16xf32>
    %c0_32 = arith.constant 0 : index
    %c0_33 = arith.constant 0 : index
    %64 = vector.load %arg9[%c0_32, %c0_33] : memref<1x16xf32, #tpu.memory_space<vmem>>, vector<1x16xf32>
    %65 = vector.broadcast %64 : vector<1x16xf32> to vector<16x16xf32>
    %66 = arith.addf %63, %65 : vector<16x16xf32>
    %67 = arith.mulf %66, %66 : vector<16x16xf32>
    %68 = arith.mulf %66, %67 : vector<16x16xf32>
    %cst_34 = arith.constant 4.471500e-02 : f32
    %69 = vector.broadcast %cst_34 : f32 to vector<16x16xf32>
    %70 = arith.mulf %69, %68 : vector<16x16xf32>
    %71 = arith.addf %66, %70 : vector<16x16xf32>
    %cst_35 = arith.constant 0.797884583 : f32
    %72 = vector.broadcast %cst_35 : f32 to vector<16x16xf32>
    %73 = arith.mulf %72, %71 : vector<16x16xf32>
    %74 = math.tanh %73 : vector<16x16xf32>
    %cst_36 = arith.constant 1.000000e+00 : f32
    %75 = vector.broadcast %cst_36 : f32 to vector<16x16xf32>
    %76 = arith.addf %75, %74 : vector<16x16xf32>
    %cst_37 = arith.constant 5.000000e-01 : f32
    %77 = vector.broadcast %cst_37 : f32 to vector<16x16xf32>
    %78 = arith.mulf %77, %76 : vector<16x16xf32>
    %79 = arith.mulf %66, %78 : vector<16x16xf32>
    %80 = arith.truncf %79 : vector<16x16xf32> to vector<16x16xbf16>
    %c0_38 = arith.constant 0 : index
    %c0_39 = arith.constant 0 : index
    %81 = vector.load %arg10[%c0_38, %c0_39] : memref<16x512xbf16, #tpu.memory_space<vmem>>, vector<16x512xbf16>
    %cst_40 = arith.constant dense<0.000000e+00> : vector<16x512xf32>
    %82 = tpu.matmul %80, %81, %cst_40 {dimension_numbers = #tpu.dot_dimension_numbers<[1], [0], [0], [1], [0, 0, 1, 1], [], []>} : vector<16x16xbf16>, vector<16x512xbf16>, vector<16x512xf32> -> vector<16x512xf32>
    %c0_41 = arith.constant 0 : index
    %c0_42 = arith.constant 0 : index
    %83 = vector.load %arg11[%c0_41, %c0_42] : memref<1x512xf32, #tpu.memory_space<vmem>>, vector<1x512xf32>
    %84 = vector.broadcast %83 : vector<1x512xf32> to vector<16x512xf32>
    %85 = arith.addf %82, %84 : vector<16x512xf32>
    %86 = vector.extract_strided_slice %85 {offsets = [0, 0], sizes = [1, 128], strides = [1, 1]} : vector<16x512xf32> to vector<1x128xf32>
    %87 = vector.extract_strided_slice %85 {offsets = [0, 128], sizes = [1, 128], strides = [1, 1]} : vector<16x512xf32> to vector<1x128xf32>
    %88 = vector.extract_strided_slice %85 {offsets = [0, 256], sizes = [1, 128], strides = [1, 1]} : vector<16x512xf32> to vector<1x128xf32>
    %89 = vector.extract_strided_slice %85 {offsets = [0, 384], sizes = [1, 128], strides = [1, 1]} : vector<16x512xf32> to vector<1x128xf32>
    %90 = vector.extract_strided_slice %41 {offsets = [0, 0], sizes = [1, 32], strides = [1, 1]} : vector<16x64xf32> to vector<1x32xf32>
    %91 = vector.extract_strided_slice %41 {offsets = [0, 32], sizes = [1, 32], strides = [1, 1]} : vector<16x64xf32> to vector<1x32xf32>
    %92 = tpu.concatenate %90, %91 in 0 : vector<1x32xf32>, vector<1x32xf32> -> vector<2x32xf32>
    %cst_43 = arith.constant 0.000000e+00 : f32
    %93 = vector.broadcast %cst_43 : f32 to vector<14x32xf32>
    %94 = tpu.concatenate %92, %93 in 0 : vector<2x32xf32>, vector<14x32xf32> -> vector<16x32xf32>
    %95 = arith.truncf %94 : vector<16x32xf32> to vector<16x32xbf16>
    %c0_44 = arith.constant 0 : index
    %c0_45 = arith.constant 0 : index
    %96 = vector.load %arg12[%c0_44, %c0_45] : memref<32x128xbf16, #tpu.memory_space<vmem>>, vector<32x128xbf16>
    %cst_46 = arith.constant dense<0.000000e+00> : vector<16x128xf32>
    %97 = tpu.matmul %95, %96, %cst_46 {dimension_numbers = #tpu.dot_dimension_numbers<[1], [0], [0], [1], [0, 0, 1, 1], [], []>} : vector<16x32xbf16>, vector<32x128xbf16>, vector<16x128xf32> -> vector<16x128xf32>
    %c0_47 = arith.constant 0 : index
    %c0_48 = arith.constant 0 : index
    %98 = vector.load %arg13[%c0_47, %c0_48] : memref<1x128xf32, #tpu.memory_space<vmem>>, vector<1x128xf32>
    %99 = vector.broadcast %98 : vector<1x128xf32> to vector<16x128xf32>
    %100 = arith.addf %97, %99 : vector<16x128xf32>
    %101 = vector.broadcast %86 : vector<1x128xf32> to vector<16x128xf32>
    %102 = arith.mulf %100, %101 : vector<16x128xf32>
    %103 = vector.broadcast %87 : vector<1x128xf32> to vector<16x128xf32>
    %104 = arith.addf %102, %103 : vector<16x128xf32>
    %105 = arith.mulf %104, %104 : vector<16x128xf32>
    %106 = arith.mulf %104, %105 : vector<16x128xf32>
    %cst_49 = arith.constant 4.471500e-02 : f32
    %107 = vector.broadcast %cst_49 : f32 to vector<16x128xf32>
    %108 = arith.mulf %107, %106 : vector<16x128xf32>
    %109 = arith.addf %104, %108 : vector<16x128xf32>
    %cst_50 = arith.constant 0.797884583 : f32
    %110 = vector.broadcast %cst_50 : f32 to vector<16x128xf32>
    %111 = arith.mulf %110, %109 : vector<16x128xf32>
    %112 = math.tanh %111 : vector<16x128xf32>
    %cst_51 = arith.constant 1.000000e+00 : f32
    %113 = vector.broadcast %cst_51 : f32 to vector<16x128xf32>
    %114 = arith.addf %113, %112 : vector<16x128xf32>
    %cst_52 = arith.constant 5.000000e-01 : f32
    %115 = vector.broadcast %cst_52 : f32 to vector<16x128xf32>
    %116 = arith.mulf %115, %114 : vector<16x128xf32>
    %117 = arith.mulf %104, %116 : vector<16x128xf32>
    %118 = vector.extract_strided_slice %117 {offsets = [0, 0], sizes = [2, 128], strides = [1, 1]} : vector<16x128xf32> to vector<2x128xf32>
    %c0_53 = arith.constant 0 : index
    %c0_54 = arith.constant 0 : index
    %c0_55 = arith.constant 0 : index
    %119 = vector.load %arg18[%c0_53, %c0_54, %c0_55] : memref<1x2x128xf32, #tpu.memory_space<vmem>>, vector<1x2x128xf32>
    %120 = vector.shape_cast %119 : vector<1x2x128xf32> to vector<2x128xf32>
    %121 = vector.shape_cast %118 : vector<2x128xf32> to vector<1x2x128xf32>
    tpu.vector_store %arg18[%c0_53, %c0_54, %c0_55], %121 {strides = array<i32>} : memref<1x2x128xf32, #tpu.memory_space<vmem>>, vector<1x2x128xf32>,
    %122 = vector.extract_strided_slice %117 {offsets = [0, 0], sizes = [1, 64], strides = [1, 1]} : vector<16x128xf32> to vector<1x64xf32>
    %123 = vector.extract_strided_slice %117 {offsets = [0, 64], sizes = [1, 64], strides = [1, 1]} : vector<16x128xf32> to vector<1x64xf32>
    %124 = vector.extract_strided_slice %117 {offsets = [1, 0], sizes = [1, 64], strides = [1, 1]} : vector<16x128xf32> to vector<1x64xf32>
    %125 = vector.extract_strided_slice %117 {offsets = [1, 64], sizes = [1, 64], strides = [1, 1]} : vector<16x128xf32> to vector<1x64xf32>
    %126 = tpu.concatenate %122, %123, %124, %125 in 0 : vector<1x64xf32>, vector<1x64xf32>, vector<1x64xf32>, vector<1x64xf32> -> vector<4x64xf32>
    %cst_56 = arith.constant 0.000000e+00 : f32
    %127 = vector.broadcast %cst_56 : f32 to vector<4x16xf32>
    %128 = tpu.concatenate %127, %126, %127 in 1 : vector<4x16xf32>, vector<4x64xf32>, vector<4x16xf32> -> vector<4x96xf32>
    %cst_57 = arith.constant 0.000000e+00 : f32
    %129 = vector.broadcast %cst_57 : f32 to vector<1x96xf32>
    %130 = tpu.concatenate %129, %128, %129 in 0 : vector<1x96xf32>, vector<4x96xf32>, vector<1x96xf32> -> vector<6x96xf32>
    %131 = vector.extract_strided_slice %130 {offsets = [0, 0], sizes = [4, 64], strides = [1, 1]} : vector<6x96xf32> to vector<4x64xf32>
    %132 = vector.extract_strided_slice %130 {offsets = [0, 16], sizes = [4, 64], strides = [1, 1]} : vector<6x96xf32> to vector<4x64xf32>
    %133 = vector.extract_strided_slice %130 {offsets = [0, 32], sizes = [4, 64], strides = [1, 1]} : vector<6x96xf32> to vector<4x64xf32>
    %134 = vector.extract_strided_slice %130 {offsets = [1, 0], sizes = [4, 64], strides = [1, 1]} : vector<6x96xf32> to vector<4x64xf32>
    %135 = vector.extract_strided_slice %130 {offsets = [1, 16], sizes = [4, 64], strides = [1, 1]} : vector<6x96xf32> to vector<4x64xf32>
    %136 = vector.extract_strided_slice %130 {offsets = [1, 32], sizes = [4, 64], strides = [1, 1]} : vector<6x96xf32> to vector<4x64xf32>
    %137 = vector.extract_strided_slice %130 {offsets = [2, 0], sizes = [4, 64], strides = [1, 1]} : vector<6x96xf32> to vector<4x64xf32>
    %138 = vector.extract_strided_slice %130 {offsets = [2, 16], sizes = [4, 64], strides = [1, 1]} : vector<6x96xf32> to vector<4x64xf32>
    %139 = vector.extract_strided_slice %130 {offsets = [2, 32], sizes = [4, 64], strides = [1, 1]} : vector<6x96xf32> to vector<4x64xf32>
    %140 = tpu.concatenate %131, %132, %133, %134, %135, %136, %137, %138, %139 in 1 : vector<4x64xf32>, vector<4x64xf32>, vector<4x64xf32>, vector<4x64xf32>, vector<4x64xf32>, vector<4x64xf32>, vector<4x64xf32>, vector<4x64xf32>, vector<4x64xf32> -> vector<4x576xf32>
    %cst_58 = arith.constant 0.000000e+00 : f32
    %141 = vector.broadcast %cst_58 : f32 to vector<12x576xf32>
    %142 = tpu.concatenate %140, %141 in 0 : vector<4x576xf32>, vector<12x576xf32> -> vector<16x576xf32>
    %143 = arith.truncf %142 : vector<16x576xf32> to vector<16x576xbf16>
    %c0_59 = arith.constant 0 : index
    %c0_60 = arith.constant 0 : index
    %144 = vector.load %arg14[%c0_59, %c0_60] : memref<576x128xbf16, #tpu.memory_space<vmem>>, vector<576x128xbf16>
    %cst_61 = arith.constant dense<0.000000e+00> : vector<16x128xf32>
    %145 = tpu.matmul %143, %144, %cst_61 {dimension_numbers = #tpu.dot_dimension_numbers<[1], [0], [0], [1], [0, 0, 1, 1], [], []>} : vector<16x576xbf16>, vector<576x128xbf16>, vector<16x128xf32> -> vector<16x128xf32>
    %c0_62 = arith.constant 0 : index
    %c0_63 = arith.constant 0 : index
    %146 = vector.load %arg15[%c0_62, %c0_63] : memref<1x128xf32, #tpu.memory_space<vmem>>, vector<1x128xf32>
    %147 = vector.broadcast %146 : vector<1x128xf32> to vector<16x128xf32>
    %148 = arith.addf %145, %147 : vector<16x128xf32>
    %149 = vector.broadcast %88 : vector<1x128xf32> to vector<16x128xf32>
    %150 = arith.mulf %148, %149 : vector<16x128xf32>
    %151 = vector.broadcast %89 : vector<1x128xf32> to vector<16x128xf32>
    %152 = arith.addf %150, %151 : vector<16x128xf32>
    %153 = arith.mulf %152, %152 : vector<16x128xf32>
    %154 = arith.mulf %152, %153 : vector<16x128xf32>
    %cst_64 = arith.constant 4.471500e-02 : f32
    %155 = vector.broadcast %cst_64 : f32 to vector<16x128xf32>
    %156 = arith.mulf %155, %154 : vector<16x128xf32>
    %157 = arith.addf %152, %156 : vector<16x128xf32>
    %cst_65 = arith.constant 0.797884583 : f32
    %158 = vector.broadcast %cst_65 : f32 to vector<16x128xf32>
    %159 = arith.mulf %158, %157 : vector<16x128xf32>
    %160 = math.tanh %159 : vector<16x128xf32>
    %cst_66 = arith.constant 1.000000e+00 : f32
    %161 = vector.broadcast %cst_66 : f32 to vector<16x128xf32>
    %162 = arith.addf %161, %160 : vector<16x128xf32>
    %cst_67 = arith.constant 5.000000e-01 : f32
    %163 = vector.broadcast %cst_67 : f32 to vector<16x128xf32>
    %164 = arith.mulf %163, %162 : vector<16x128xf32>
    %165 = arith.mulf %152, %164 : vector<16x128xf32>
    %166 = vector.extract_strided_slice %165 {offsets = [0, 0], sizes = [4, 128], strides = [1, 1]} : vector<16x128xf32> to vector<4x128xf32>
    %c0_68 = arith.constant 0 : index
    %c0_69 = arith.constant 0 : index
    %c0_70 = arith.constant 0 : index
    %167 = vector.load %arg19[%c0_68, %c0_69, %c0_70] : memref<1x4x128xf32, #tpu.memory_space<vmem>>, vector<1x4x128xf32>
    %168 = vector.shape_cast %167 : vector<1x4x128xf32> to vector<4x128xf32>
    %169 = vector.shape_cast %166 : vector<4x128xf32> to vector<1x4x128xf32>
    tpu.vector_store %arg19[%c0_68, %c0_69, %c0_70], %169 {strides = array<i32>} : memref<1x4x128xf32, #tpu.memory_space<vmem>>, vector<1x4x128xf32>,
    %170 = vector.extract_strided_slice %165 {offsets = [0, 0], sizes = [1, 64], strides = [1, 1]} : vector<16x128xf32> to vector<1x64xf32>
    %171 = vector.extract_strided_slice %165 {offsets = [0, 64], sizes = [1, 64], strides = [1, 1]} : vector<16x128xf32> to vector<1x64xf32>
    %172 = vector.extract_strided_slice %165 {offsets = [1, 0], sizes = [1, 64], strides = [1, 1]} : vector<16x128xf32> to vector<1x64xf32>
    %173 = vector.extract_strided_slice %165 {offsets = [1, 64], sizes = [1, 64], strides = [1, 1]} : vector<16x128xf32> to vector<1x64xf32>
    %174 = vector.extract_strided_slice %165 {offsets = [2, 0], sizes = [1, 64], strides = [1, 1]} : vector<16x128xf32> to vector<1x64xf32>
    %175 = vector.extract_strided_slice %165 {offsets = [2, 64], sizes = [1, 64], strides = [1, 1]} : vector<16x128xf32> to vector<1x64xf32>
    %176 = vector.extract_strided_slice %165 {offsets = [3, 0], sizes = [1, 64], strides = [1, 1]} : vector<16x128xf32> to vector<1x64xf32>
    %177 = vector.extract_strided_slice %165 {offsets = [3, 64], sizes = [1, 64], strides = [1, 1]} : vector<16x128xf32> to vector<1x64xf32>
    %178 = tpu.concatenate %170, %171, %172, %173, %174, %175, %176, %177 in 0 : vector<1x64xf32>, vector<1x64xf32>, vector<1x64xf32>, vector<1x64xf32>, vector<1x64xf32>, vector<1x64xf32>, vector<1x64xf32>, vector<1x64xf32> -> vector<8x64xf32>
    %cst_71 = arith.constant 0.000000e+00 : f32
    %179 = vector.broadcast %cst_71 : f32 to vector<8x64xf32>
    %180 = tpu.concatenate %178, %179 in 0 : vector<8x64xf32>, vector<8x64xf32> -> vector<16x64xf32>
    %181 = arith.truncf %180 : vector<16x64xf32> to vector<16x64xbf16>
    %c0_72 = arith.constant 0 : index
    %c0_73 = arith.constant 0 : index
    %182 = vector.load %arg16[%c0_72, %c0_73] : memref<64x128xbf16, #tpu.memory_space<vmem>>, vector<64x128xbf16>
    %cst_74 = arith.constant dense<0.000000e+00> : vector<16x128xf32>
    %183 = tpu.matmul %181, %182, %cst_74 {dimension_numbers = #tpu.dot_dimension_numbers<[1], [0], [0], [1], [0, 0, 1, 1], [], []>} : vector<16x64xbf16>, vector<64x128xbf16>, vector<16x128xf32> -> vector<16x128xf32>
    %c0_75 = arith.constant 0 : index
    %c0_76 = arith.constant 0 : index
    %184 = vector.load %arg17[%c0_75, %c0_76] : memref<1x128xf32, #tpu.memory_space<vmem>>, vector<1x128xf32>
    %185 = vector.broadcast %184 : vector<1x128xf32> to vector<16x128xf32>
    %186 = arith.addf %183, %185 : vector<16x128xf32>
    %187 = vector.extract_strided_slice %186 {offsets = [0, 0], sizes = [8, 128], strides = [1, 1]} : vector<16x128xf32> to vector<8x128xf32>
    %188 = math.tanh %187 : vector<8x128xf32>
    %cst_77 = arith.constant 5.000000e-01 : f32
    %189 = vector.broadcast %cst_77 : f32 to vector<8x128xf32>
    %190 = arith.mulf %188, %189 : vector<8x128xf32>
    %cst_78 = arith.constant 5.000000e-01 : f32
    %191 = vector.broadcast %cst_78 : f32 to vector<8x128xf32>
    %192 = arith.addf %190, %191 : vector<8x128xf32>
    %c0_79 = arith.constant 0 : index
    %c0_80 = arith.constant 0 : index
    %c0_81 = arith.constant 0 : index
    %193 = vector.load %arg20[%c0_79, %c0_80, %c0_81] : memref<1x8x128xf32, #tpu.memory_space<vmem>>, vector<1x8x128xf32>
    %194 = vector.shape_cast %193 : vector<1x8x128xf32> to vector<8x128xf32>
    %195 = vector.shape_cast %192 : vector<8x128xf32> to vector<1x8x128xf32>
    tpu.vector_store %arg20[%c0_79, %c0_80, %c0_81], %195 {strides = array<i32>} : memref<1x8x128xf32, #tpu.memory_space<vmem>>, vector<1x8x128xf32>,
    return
  }
  func.func @transform_0(%arg0: i32) -> (i32, i32, i32) {
    %c0_i32 = arith.constant 0 : i32
    %c0_i32_0 = arith.constant 0 : i32
    %c0_i32_1 = arith.constant 0 : i32
    return %arg0, %c0_i32, %c0_i32_0 : i32, i32, i32
  }
  func.func @transform_1(%arg0: i32) -> (i32, i32) {
    %c0_i32 = arith.constant 0 : i32
    %c0_i32_0 = arith.constant 0 : i32
    %c0_i32_1 = arith.constant 0 : i32
    return %c0_i32, %c0_i32_0 : i32, i32
  }
  func.func @transform_2(%arg0: i32) -> (i32, i32) {
    %c0_i32 = arith.constant 0 : i32
    %c0_i32_0 = arith.constant 0 : i32
    %c0_i32_1 = arith.constant 0 : i32
    return %c0_i32, %c0_i32_0 : i32, i32
  }
  func.func @transform_3(%arg0: i32) -> (i32, i32) {
    %c0_i32 = arith.constant 0 : i32
    %c0_i32_0 = arith.constant 0 : i32
    %c0_i32_1 = arith.constant 0 : i32
    return %c0_i32, %c0_i32_0 : i32, i32
  }
  func.func @transform_4(%arg0: i32) -> (i32, i32) {
    %c0_i32 = arith.constant 0 : i32
    %c0_i32_0 = arith.constant 0 : i32
    %c0_i32_1 = arith.constant 0 : i32
    return %c0_i32, %c0_i32_0 : i32, i32
  }
  func.func @transform_5(%arg0: i32) -> (i32, i32) {
    %c0_i32 = arith.constant 0 : i32
    %c0_i32_0 = arith.constant 0 : i32
    %c0_i32_1 = arith.constant 0 : i32
    return %c0_i32, %c0_i32_0 : i32, i32
  }
  func.func @transform_6(%arg0: i32) -> (i32, i32) {
    %c0_i32 = arith.constant 0 : i32
    %c0_i32_0 = arith.constant 0 : i32
    %c0_i32_1 = arith.constant 0 : i32
    return %c0_i32, %c0_i32_0 : i32, i32
  }
  func.func @transform_7(%arg0: i32) -> (i32, i32) {
    %c0_i32 = arith.constant 0 : i32
    %c0_i32_0 = arith.constant 0 : i32
    %c0_i32_1 = arith.constant 0 : i32
    return %c0_i32, %c0_i32_0 : i32, i32
  }
  func.func @transform_8(%arg0: i32) -> (i32, i32) {
    %c0_i32 = arith.constant 0 : i32
    %c0_i32_0 = arith.constant 0 : i32
    %c0_i32_1 = arith.constant 0 : i32
    return %c0_i32, %c0_i32_0 : i32, i32
  }
  func.func @transform_9(%arg0: i32) -> (i32, i32) {
    %c0_i32 = arith.constant 0 : i32
    %c0_i32_0 = arith.constant 0 : i32
    %c0_i32_1 = arith.constant 0 : i32
    return %c0_i32, %c0_i32_0 : i32, i32
  }
  func.func @transform_10(%arg0: i32) -> (i32, i32) {
    %c0_i32 = arith.constant 0 : i32
    %c0_i32_0 = arith.constant 0 : i32
    %c0_i32_1 = arith.constant 0 : i32
    return %c0_i32, %c0_i32_0 : i32, i32
  }
  func.func @transform_11(%arg0: i32) -> (i32, i32) {
    %c0_i32 = arith.constant 0 : i32
    %c0_i32_0 = arith.constant 0 : i32
    %c0_i32_1 = arith.constant 0 : i32
    return %c0_i32, %c0_i32_0 : i32, i32
  }
  func.func @transform_12(%arg0: i32) -> (i32, i32) {
    %c0_i32 = arith.constant 0 : i32
    %c0_i32_0 = arith.constant 0 : i32
    %c0_i32_1 = arith.constant 0 : i32
    return %c0_i32, %c0_i32_0 : i32, i32
  }
  func.func @transform_13(%arg0: i32) -> (i32, i32) {
    %c0_i32 = arith.constant 0 : i32
    %c0_i32_0 = arith.constant 0 : i32
    %c0_i32_1 = arith.constant 0 : i32
    return %c0_i32, %c0_i32_0 : i32, i32
  }
  func.func @transform_14(%arg0: i32) -> (i32, i32) {
    %c0_i32 = arith.constant 0 : i32
    %c0_i32_0 = arith.constant 0 : i32
    %c0_i32_1 = arith.constant 0 : i32
    return %c0_i32, %c0_i32_0 : i32, i32
  }
  func.func @transform_15(%arg0: i32) -> (i32, i32) {
    %c0_i32 = arith.constant 0 : i32
    %c0_i32_0 = arith.constant 0 : i32
    %c0_i32_1 = arith.constant 0 : i32
    return %c0_i32, %c0_i32_0 : i32, i32
  }
  func.func @transform_16(%arg0: i32) -> (i32, i32) {
    %c0_i32 = arith.constant 0 : i32
    %c0_i32_0 = arith.constant 0 : i32
    %c0_i32_1 = arith.constant 0 : i32
    return %c0_i32, %c0_i32_0 : i32, i32
  }
  func.func @transform_17(%arg0: i32) -> (i32, i32, i32) {
    %c0_i32 = arith.constant 0 : i32
    %c0_i32_0 = arith.constant 0 : i32
    %c0_i32_1 = arith.constant 0 : i32
    return %arg0, %c0_i32, %c0_i32_0 : i32, i32, i32
  }
  func.func @transform_18(%arg0: i32) -> (i32, i32, i32) {
    %c0_i32 = arith.constant 0 : i32
    %c0_i32_0 = arith.constant 0 : i32
    %c0_i32_1 = arith.constant 0 : i32
    return %arg0, %c0_i32, %c0_i32_0 : i32, i32, i32
  }
  func.func @transform_19(%arg0: i32) -> (i32, i32, i32) {
    %c0_i32 = arith.constant 0 : i32
    %c0_i32_0 = arith.constant 0 : i32
    %c0_i32_1 = arith.constant 0 : i32
    return %arg0, %c0_i32, %c0_i32_0 : i32, i32, i32
  }
}

</mosaic_0001>

<llo_original>
// kernel: forward.1
$region0: #{forward.1}
  #allocation0 [shape = 'u32[]', space=smem, size = 0x4, offset = 0x4, fixed_abs, tag = 'smem constant byte address 0x4 - core index']
  #allocation1 [shape = 'u32[144,128]{1,0:T(1,128)}', space=vmem, size = 0x12000, scoped, tag = 'internal scratch']
  %s0 = inlined_call_operand.vmem [shape: f32[2,1,16], index: 0, kind: input, shape index: {}]
  %s1 = inlined_call_operand.vmem [shape: bf16[16,256], index: 1, kind: input, shape index: {}]
  %s2 = inlined_call_operand.vmem [shape: f32[1,256], index: 2, kind: input, shape index: {}]
  %s3 = inlined_call_operand.vmem [shape: bf16[256,64], index: 3, kind: input, shape index: {}]
  %s4 = inlined_call_operand.vmem [shape: f32[1,64], index: 4, kind: input, shape index: {}]
  %s5 = inlined_call_operand.vmem [shape: bf16[16,32], index: 5, kind: input, shape index: {}]
  %s6 = inlined_call_operand.vmem [shape: f32[1,32], index: 6, kind: input, shape index: {}]
  %s7 = inlined_call_operand.vmem [shape: bf16[32,16], index: 7, kind: input, shape index: {}]
  %s8 = inlined_call_operand.vmem [shape: f32[1,16], index: 8, kind: input, shape index: {}]
  %s9 = inlined_call_operand.vmem [shape: bf16[16,512], index: 9, kind: input, shape index: {}]
  %s10 = inlined_call_operand.vmem [shape: f32[1,512], index: 10, kind: input, shape index: {}]
  %s11 = inlined_call_operand.vmem [shape: bf16[32,128], index: 11, kind: input, shape index: {}]
  %s12 = inlined_call_operand.vmem [shape: f32[1,128], index: 12, kind: input, shape index: {}]
  %s13 = inlined_call_operand.hbm [shape: bf16[576,128], index: 13, kind: input, shape index: {}]
  %s14 = inlined_call_operand.vmem [shape: f32[1,128], index: 14, kind: input, shape index: {}]
  %s15 = inlined_call_operand.vmem [shape: bf16[64,128], index: 15, kind: input, shape index: {}]
  %s16 = inlined_call_operand.vmem [shape: f32[1,128], index: 16, kind: input, shape index: {}]
  %s17 = inlined_call_operand.vmem [shape: f32[2,2,128], index: 17, kind: output, shape index: {0}]
  %s18 = inlined_call_operand.vmem [shape: f32[2,4,128], index: 18, kind: output, shape index: {1}]
  %s19 = inlined_call_operand.vmem [shape: f32[2,8,128], index: 19, kind: output, shape index: {2}]
  %20 = xla_tuple %s17, %s18, %s19
  %s21 = sld [smem:[#allocation0]]
  $region121: #{forward.1} parent=0
    _
  %s23 = ssub.s32 1, %s21
  %s24 = scalar_select 0, %s23, %s21
  $region1: #{forward.1} parent=0
    #allocation2 [shape = 'u8[147456]{0}', space=vmem, size = 0x24000, scoped, tag = 'input window, operand 13, single buffered']
    #allocation3 [shape = 's32[2]{0}', space=sflag, size = 0x8, scoped, tag = 'scoped memory for forward.1']
    %25 = vsyncpa [#allocation3], 0
    loop: start=0, step=1, limit=4
    $region2: #{forward.1} parent=1 // loop_pre_header
      _
    $region3: #{forward.1} parent=1 // loop_header
      %s27 = sphi 0, %s31
      %p28 = scmp.ge.s32.totalorder %s27, 4
      %s37 = sphi 0, %s39
      %s40 = sphi 0, %s37
      %s41 = sphi 0, %s40
      %s57 = sphi 0, %s41
      %s61 = sphi 0, %s61
      %s63 = sphi 0, %s61
      %s64 = sphi 0, %s63
      %s78 = sphi 0, %s64
      %s82 = sphi 0, %s82
      %s84 = sphi 0, %s82
      %s85 = sphi 0, %s84
      %s99 = sphi 0, %s85
      %s103 = sphi 0, %s103
      %s105 = sphi 0, %s103
      %s106 = sphi 0, %s105
      %s120 = sphi 0, %s106
      %s124 = sphi 0, %s124
      %s126 = sphi 0, %s124
      %s127 = sphi 0, %s126
      %s141 = sphi 0, %s127
      %s145 = sphi 0, %s145
      %s147 = sphi 0, %s145
      %s148 = sphi 0, %s147
      %s162 = sphi 0, %s148
      %s166 = sphi 0, %s166
      %s168 = sphi 0, %s166
      %s169 = sphi 0, %s168
      %s183 = sphi 0, %s169
      %s187 = sphi 0, %s187
      %s189 = sphi 0, %s187
      %s190 = sphi 0, %s189
      %s204 = sphi 0, %s190
      %s208 = sphi 0, %s208
      %s210 = sphi 0, %s208
      %s211 = sphi 0, %s210
      %s225 = sphi 0, %s211
      %s229 = sphi 0, %s229
      %s231 = sphi 0, %s229
      %s232 = sphi 0, %s231
      %s246 = sphi 0, %s232
      %s250 = sphi 0, %s250
      %s252 = sphi 0, %s250
      %s253 = sphi 0, %s252
      %s267 = sphi 0, %s253
      %s271 = sphi 0, %s271
      %s273 = sphi 0, %s271
      %s274 = sphi 0, %s273
      %s288 = sphi 0, %s274
      %s292 = sphi 0, %s292
      %s294 = sphi 0, %s292
      %s295 = sphi 0, %s294
      %s309 = sphi 0, %s295
      %s313 = sphi 0, %s313
      %s315 = sphi 0, %s313
      %s316 = sphi 0, %s315
      %s330 = sphi 0, %s316
      %s334 = sphi 0, %s334
      %s336 = sphi 0, %s334
      %s337 = sphi 0, %s336
      %s351 = sphi 0, %s337
      %s355 = sphi 0, %s355
      %s357 = sphi 0, %s355
      %s358 = sphi 0, %s357
      %s372 = sphi 0, %s358
      %s376 = sphi 0, %s376
      %s378 = sphi 0, %s376
      %s379 = sphi 0, %s378
      %s393 = sphi 0, %s379
      %s399 = sphi 0, %s401
      %s402 = sphi 0, %s399
      %s403 = sphi 0, %s402
      %s419 = sphi 0, %s403
      %s425 = sphi 0, %s427
      %s428 = sphi 0, %s425
      %s429 = sphi 0, %s428
      %s445 = sphi 0, %s429
      %s451 = sphi 0, %s453
      %s454 = sphi 0, %s451
      %s455 = sphi 0, %s454
      %s471 = sphi 0, %s455
    $region4: #{forward.1} parent=1 // loop_header_branch
      %30 = sbr.rel (%p28) target = $region8
    $region5: #{forward.1} parent=1 // loop_body
      %s32 = ssub.s32 %s27, 1
      %s33 = ssub.s32 %s27, 2
      %s34 = sadd.s32 %s27, 1
      %s35 = ssub.s32 %s27, %s34
      %p36 = scmp.eq.s32.totalorder %s35, 0
      %s38 = sadd.s32 %s37, 1
      %s39 = scalar_select %p36, %s37, %s38
      %p42 = pneg %p36
      %p43 = scmp.eq.s32.totalorder %s27, 1
      %p44 = por %p42, %p43
      %p45 = scmp.ne.s32.totalorder %s37, %s40
      %p46 = scmp.eq.s32.totalorder %s27, 0
      %p47 = por %p45, %p46
      %p48 = scmp.ne.s32.totalorder %s37, %s40
      %p49 = scmp.eq.s32.totalorder %s32, 1
      %p50 = por %p48, %p49
      %p51 = scmp.ne.s32.totalorder %s40, %s41
      %p52 = scmp.eq.s32.totalorder %s32, 0
      %p53 = por %p51, %p52
      %p54 = scmp.ne.s32.totalorder %s40, %s41
      %p55 = scmp.eq.s32.totalorder %s33, 1
      %p56 = por %p54, %p55
      %p58 = scmp.ne.s32.totalorder %s41, %s57
      %p59 = scmp.eq.s32.totalorder %s33, 0
      %p60 = por %p58, %p59
      %s62 = sadd.s32 %s61, 1
      %p65 = scmp.eq.s32.totalorder %s27, 1
      %p66 = scmp.ne.s32.totalorder %s61, %s63
      %p67 = scmp.eq.s32.totalorder %s27, 0
      %p68 = por %p66, %p67
      %p69 = scmp.ne.s32.totalorder %s61, %s63
      %p70 = scmp.eq.s32.totalorder %s32, 1
      %p71 = por %p69, %p70
      %p72 = scmp.ne.s32.totalorder %s63, %s64
      %p73 = scmp.eq.s32.totalorder %s32, 0
      %p74 = por %p72, %p73
      %p75 = scmp.ne.s32.totalorder %s63, %s64
      %p76 = scmp.eq.s32.totalorder %s33, 1
      %p77 = por %p75, %p76
      %p79 = scmp.ne.s32.totalorder %s64, %s78
      %p80 = scmp.eq.s32.totalorder %s33, 0
      %p81 = por %p79, %p80
      %s83 = sadd.s32 %s82, 1
      %p86 = scmp.eq.s32.totalorder %s27, 1
      %p87 = scmp.ne.s32.totalorder %s82, %s84
      %p88 = scmp.eq.s32.totalorder %s27, 0
      %p89 = por %p87, %p88
      %p90 = scmp.ne.s32.totalorder %s82, %s84
      %p91 = scmp.eq.s32.totalorder %s32, 1
      %p92 = por %p90, %p91
      %p93 = scmp.ne.s32.totalorder %s84, %s85
      %p94 = scmp.eq.s32.totalorder %s32, 0
      %p95 = por %p93, %p94
      %p96 = scmp.ne.s32.totalorder %s84, %s85
      %p97 = scmp.eq.s32.totalorder %s33, 1
      %p98 = por %p96, %p97
      %p100 = scmp.ne.s32.totalorder %s85, %s99
      %p101 = scmp.eq.s32.totalorder %s33, 0
      %p102 = por %p100, %p101
      %s104 = sadd.s32 %s103, 1
      %p107 = scmp.eq.s32.totalorder %s27, 1
      %p108 = scmp.ne.s32.totalorder %s103, %s105
      %p109 = scmp.eq.s32.totalorder %s27, 0
      %p110 = por %p108, %p109
      %p111 = scmp.ne.s32.totalorder %s103, %s105
      %p112 = scmp.eq.s32.totalorder %s32, 1
      %p113 = por %p111, %p112
      %p114 = scmp.ne.s32.totalorder %s105, %s106
      %p115 = scmp.eq.s32.totalorder %s32, 0
      %p116 = por %p114, %p115
      %p117 = scmp.ne.s32.totalorder %s105, %s106
      %p118 = scmp.eq.s32.totalorder %s33, 1
      %p119 = por %p117, %p118
      %p121 = scmp.ne.s32.totalorder %s106, %s120
      %p122 = scmp.eq.s32.totalorder %s33, 0
      %p123 = por %p121, %p122
      %s125 = sadd.s32 %s124, 1
      %p128 = scmp.eq.s32.totalorder %s27, 1
      %p129 = scmp.ne.s32.totalorder %s124, %s126
      %p130 = scmp.eq.s32.totalorder %s27, 0
      %p131 = por %p129, %p130
      %p132 = scmp.ne.s32.totalorder %s124, %s126
      %p133 = scmp.eq.s32.totalorder %s32, 1
      %p134 = por %p132, %p133
      %p135 = scmp.ne.s32.totalorder %s126, %s127
      %p136 = scmp.eq.s32.totalorder %s32, 0
      %p137 = por %p135, %p136
      %p138 = scmp.ne.s32.totalorder %s126, %s127
      %p139 = scmp.eq.s32.totalorder %s33, 1
      %p140 = por %p138, %p139
      %p142 = scmp.ne.s32.totalorder %s127, %s141
      %p143 = scmp.eq.s32.totalorder %s33, 0
      %p144 = por %p142, %p143
      %s146 = sadd.s32 %s145, 1
      %p149 = scmp.eq.s32.totalorder %s27, 1
      %p150 = scmp.ne.s32.totalorder %s145, %s147
      %p151 = scmp.eq.s32.totalorder %s27, 0
      %p152 = por %p150, %p151
      %p153 = scmp.ne.s32.totalorder %s145, %s147
      %p154 = scmp.eq.s32.totalorder %s32, 1
      %p155 = por %p153, %p154
      %p156 = scmp.ne.s32.totalorder %s147, %s148
      %p157 = scmp.eq.s32.totalorder %s32, 0
      %p158 = por %p156, %p157
      %p159 = scmp.ne.s32.totalorder %s147, %s148
      %p160 = scmp.eq.s32.totalorder %s33, 1
      %p161 = por %p159, %p160
      %p163 = scmp.ne.s32.totalorder %s148, %s162
      %p164 = scmp.eq.s32.totalorder %s33, 0
      %p165 = por %p163, %p164
      %s167 = sadd.s32 %s166, 1
      %p170 = scmp.eq.s32.totalorder %s27, 1
      %p171 = scmp.ne.s32.totalorder %s166, %s168
      %p172 = scmp.eq.s32.totalorder %s27, 0
      %p173 = por %p171, %p172
      %p174 = scmp.ne.s32.totalorder %s166, %s168
      %p175 = scmp.eq.s32.totalorder %s32, 1
      %p176 = por %p174, %p175
      %p177 = scmp.ne.s32.totalorder %s168, %s169
      %p178 = scmp.eq.s32.totalorder %s32, 0
      %p179 = por %p177, %p178
      %p180 = scmp.ne.s32.totalorder %s168, %s169
      %p181 = scmp.eq.s32.totalorder %s33, 1
      %p182 = por %p180, %p181
      %p184 = scmp.ne.s32.totalorder %s169, %s183
      %p185 = scmp.eq.s32.totalorder %s33, 0
      %p186 = por %p184, %p185
      %s188 = sadd.s32 %s187, 1
      %p191 = scmp.eq.s32.totalorder %s27, 1
      %p192 = scmp.ne.s32.totalorder %s187, %s189
      %p193 = scmp.eq.s32.totalorder %s27, 0
      %p194 = por %p192, %p193
      %p195 = scmp.ne.s32.totalorder %s187, %s189
      %p196 = scmp.eq.s32.totalorder %s32, 1
      %p197 = por %p195, %p196
      %p198 = scmp.ne.s32.totalorder %s189, %s190
      %p199 = scmp.eq.s32.totalorder %s32, 0
      %p200 = por %p198, %p199
      %p201 = scmp.ne.s32.totalorder %s189, %s190
      %p202 = scmp.eq.s32.totalorder %s33, 1
      %p203 = por %p201, %p202
      %p205 = scmp.ne.s32.totalorder %s190, %s204
      %p206 = scmp.eq.s32.totalorder %s33, 0
      %p207 = por %p205, %p206
      %s209 = sadd.s32 %s208, 1
      %p212 = scmp.eq.s32.totalorder %s27, 1
      %p213 = scmp.ne.s32.totalorder %s208, %s210
      %p214 = scmp.eq.s32.totalorder %s27, 0
      %p215 = por %p213, %p214
      %p216 = scmp.ne.s32.totalorder %s208, %s210
      %p217 = scmp.eq.s32.totalorder %s32, 1
      %p218 = por %p216, %p217
      %p219 = scmp.ne.s32.totalorder %s210, %s211
      %p220 = scmp.eq.s32.totalorder %s32, 0
      %p221 = por %p219, %p220
      %p222 = scmp.ne.s32.totalorder %s210, %s211
      %p223 = scmp.eq.s32.totalorder %s33, 1
      %p224 = por %p222, %p223
      %p226 = scmp.ne.s32.totalorder %s211, %s225
      %p227 = scmp.eq.s32.totalorder %s33, 0
      %p228 = por %p226, %p227
      %s230 = sadd.s32 %s229, 1
      %p233 = scmp.eq.s32.totalorder %s27, 1
      %p234 = scmp.ne.s32.totalorder %s229, %s231
      %p235 = scmp.eq.s32.totalorder %s27, 0
      %p236 = por %p234, %p235
      %p237 = scmp.ne.s32.totalorder %s229, %s231
      %p238 = scmp.eq.s32.totalorder %s32, 1
      %p239 = por %p237, %p238
      %p240 = scmp.ne.s32.totalorder %s231, %s232
      %p241 = scmp.eq.s32.totalorder %s32, 0
      %p242 = por %p240, %p241
      %p243 = scmp.ne.s32.totalorder %s231, %s232
      %p244 = scmp.eq.s32.totalorder %s33, 1
      %p245 = por %p243, %p244
      %p247 = scmp.ne.s32.totalorder %s232, %s246
      %p248 = scmp.eq.s32.totalorder %s33, 0
      %p249 = por %p247, %p248
      %s251 = sadd.s32 %s250, 1
      %p254 = scmp.eq.s32.totalorder %s27, 1
      %p255 = scmp.ne.s32.totalorder %s250, %s252
      %p256 = scmp.eq.s32.totalorder %s27, 0
      %p257 = por %p255, %p256
      %p258 = scmp.ne.s32.totalorder %s250, %s252
      %p259 = scmp.eq.s32.totalorder %s32, 1
      %p260 = por %p258, %p259
      %p261 = scmp.ne.s32.totalorder %s252, %s253
      %p262 = scmp.eq.s32.totalorder %s32, 0
      %p263 = por %p261, %p262
      %p264 = scmp.ne.s32.totalorder %s252, %s253
      %p265 = scmp.eq.s32.totalorder %s33, 1
      %p266 = por %p264, %p265
      %p268 = scmp.ne.s32.totalorder %s253, %s267
      %p269 = scmp.eq.s32.totalorder %s33, 0
      %p270 = por %p268, %p269
      %s272 = sadd.s32 %s271, 1
      %p275 = scmp.eq.s32.totalorder %s27, 1
      %p276 = scmp.ne.s32.totalorder %s271, %s273
      %p277 = scmp.eq.s32.totalorder %s27, 0
      %p278 = por %p276, %p277
      %p279 = scmp.ne.s32.totalorder %s271, %s273
      %p280 = scmp.eq.s32.totalorder %s32, 1
      %p281 = por %p279, %p280
      %p282 = scmp.ne.s32.totalorder %s273, %s274
      %p283 = scmp.eq.s32.totalorder %s32, 0
      %p284 = por %p282, %p283
      %p285 = scmp.ne.s32.totalorder %s273, %s274
      %p286 = scmp.eq.s32.totalorder %s33, 1
      %p287 = por %p285, %p286
      %p289 = scmp.ne.s32.totalorder %s274, %s288
      %p290 = scmp.eq.s32.totalorder %s33, 0
      %p291 = por %p289, %p290
      %s293 = sadd.s32 %s292, 1
      %p296 = scmp.eq.s32.totalorder %s27, 1
      %p297 = scmp.ne.s32.totalorder %s292, %s294
      %p298 = scmp.eq.s32.totalorder %s27, 0
      %p299 = por %p297, %p298
      %p300 = scmp.ne.s32.totalorder %s292, %s294
      %p301 = scmp.eq.s32.totalorder %s32, 1
      %p302 = por %p300, %p301
      %p303 = scmp.ne.s32.totalorder %s294, %s295
      %p304 = scmp.eq.s32.totalorder %s32, 0
      %p305 = por %p303, %p304
      %p306 = scmp.ne.s32.totalorder %s294, %s295
      %p307 = scmp.eq.s32.totalorder %s33, 1
      %p308 = por %p306, %p307
      %p310 = scmp.ne.s32.totalorder %s295, %s309
      %p311 = scmp.eq.s32.totalorder %s33, 0
      %p312 = por %p310, %p311
      %s314 = sadd.s32 %s313, 1
      %p317 = scmp.eq.s32.totalorder %s27, 1
      %p318 = scmp.ne.s32.totalorder %s313, %s315
      %p319 = scmp.eq.s32.totalorder %s27, 0
      %p320 = por %p318, %p319
      %p321 = scmp.ne.s32.totalorder %s313, %s315
      %p322 = scmp.eq.s32.totalorder %s32, 1
      %p323 = por %p321, %p322
      %p324 = scmp.ne.s32.totalorder %s315, %s316
      %p325 = scmp.eq.s32.totalorder %s32, 0
      %p326 = por %p324, %p325
      %p327 = scmp.ne.s32.totalorder %s315, %s316
      %p328 = scmp.eq.s32.totalorder %s33, 1
      %p329 = por %p327, %p328
      %p331 = scmp.ne.s32.totalorder %s316, %s330
      %p332 = scmp.eq.s32.totalorder %s33, 0
      %p333 = por %p331, %p332
      %s335 = sadd.s32 %s334, 1
      %p338 = scmp.eq.s32.totalorder %s27, 1
      %p339 = scmp.ne.s32.totalorder %s334, %s336
      %p340 = scmp.eq.s32.totalorder %s27, 0
      %p341 = por %p339, %p340
      %p342 = scmp.ne.s32.totalorder %s334, %s336
      %p343 = scmp.eq.s32.totalorder %s32, 1
      %p344 = por %p342, %p343
      %p345 = scmp.ne.s32.totalorder %s336, %s337
      %p346 = scmp.eq.s32.totalorder %s32, 0
      %p347 = por %p345, %p346
      %p348 = scmp.ne.s32.totalorder %s336, %s337
      %p349 = scmp.eq.s32.totalorder %s33, 1
      %p350 = por %p348, %p349
      %p352 = scmp.ne.s32.totalorder %s337, %s351
      %p353 = scmp.eq.s32.totalorder %s33, 0
      %p354 = por %p352, %p353
      %s356 = sadd.s32 %s355, 1
      %p359 = scmp.eq.s32.totalorder %s27, 1
      %p360 = scmp.ne.s32.totalorder %s355, %s357
      %p361 = scmp.eq.s32.totalorder %s27, 0
      %p362 = por %p360, %p361
      %p363 = scmp.ne.s32.totalorder %s355, %s357
      %p364 = scmp.eq.s32.totalorder %s32, 1
      %p365 = por %p363, %p364
      %p366 = scmp.ne.s32.totalorder %s357, %s358
      %p367 = scmp.eq.s32.totalorder %s32, 0
      %p368 = por %p366, %p367
      %p369 = scmp.ne.s32.totalorder %s357, %s358
      %p370 = scmp.eq.s32.totalorder %s33, 1
      %p371 = por %p369, %p370
      %p373 = scmp.ne.s32.totalorder %s358, %s372
      %p374 = scmp.eq.s32.totalorder %s33, 0
      %p375 = por %p373, %p374
      %s377 = sadd.s32 %s376, 1
      %p380 = scmp.eq.s32.totalorder %s27, 1
      %p381 = scmp.ne.s32.totalorder %s376, %s378
      %p382 = scmp.eq.s32.totalorder %s27, 0
      %p383 = por %p381, %p382
      %p384 = scmp.ne.s32.totalorder %s376, %s378
      %p385 = scmp.eq.s32.totalorder %s32, 1
      %p386 = por %p384, %p385
      %p387 = scmp.ne.s32.totalorder %s378, %s379
      %p388 = scmp.eq.s32.totalorder %s32, 0
      %p389 = por %p387, %p388
      %p390 = scmp.ne.s32.totalorder %s378, %s379
      %p391 = scmp.eq.s32.totalorder %s33, 1
      %p392 = por %p390, %p391
      %p394 = scmp.ne.s32.totalorder %s379, %s393
      %p395 = scmp.eq.s32.totalorder %s33, 0
      %p396 = por %p394, %p395
      %s397 = ssub.s32 %s27, %s34
      %p398 = scmp.eq.s32.totalorder %s397, 0
      %s400 = sadd.s32 %s399, 1
      %s401 = scalar_select %p398, %s399, %s400
      %p404 = pneg %p398
      %p405 = scmp.eq.s32.totalorder %s27, 1
      %p406 = por %p404, %p405
      %p407 = scmp.ne.s32.totalorder %s399, %s402
      %p408 = scmp.eq.s32.totalorder %s27, 0
      %p409 = por %p407, %p408
      %p410 = scmp.ne.s32.totalorder %s399, %s402
      %p411 = scmp.eq.s32.totalorder %s32, 1
      %p412 = por %p410, %p411
      %p413 = scmp.ne.s32.totalorder %s402, %s403
      %p414 = scmp.eq.s32.totalorder %s32, 0
      %p415 = por %p413, %p414
      %p416 = scmp.ne.s32.totalorder %s402, %s403
      %p417 = scmp.eq.s32.totalorder %s33, 1
      %p418 = por %p416, %p417
      %p420 = scmp.ne.s32.totalorder %s403, %s419
      %p421 = scmp.eq.s32.totalorder %s33, 0
      %p422 = por %p420, %p421
      %s423 = ssub.s32 %s27, %s34
      %p424 = scmp.eq.s32.totalorder %s423, 0
      %s426 = sadd.s32 %s425, 1
      %s427 = scalar_select %p424, %s425, %s426
      %p430 = pneg %p424
      %p431 = scmp.eq.s32.totalorder %s27, 1
      %p432 = por %p430, %p431
      %p433 = scmp.ne.s32.totalorder %s425, %s428
      %p434 = scmp.eq.s32.totalorder %s27, 0
      %p435 = por %p433, %p434
      %p436 = scmp.ne.s32.totalorder %s425, %s428
      %p437 = scmp.eq.s32.totalorder %s32, 1
      %p438 = por %p436, %p437
      %p439 = scmp.ne.s32.totalorder %s428, %s429
      %p440 = scmp.eq.s32.totalorder %s32, 0
      %p441 = por %p439, %p440
      %p442 = scmp.ne.s32.totalorder %s428, %s429
      %p443 = scmp.eq.s32.totalorder %s33, 1
      %p444 = por %p442, %p443
      %p446 = scmp.ne.s32.totalorder %s429, %s445
      %p447 = scmp.eq.s32.totalorder %s33, 0
      %p448 = por %p446, %p447
      %s449 = ssub.s32 %s27, %s34
      %p450 = scmp.eq.s32.totalorder %s449, 0
      %s452 = sadd.s32 %s451, 1
      %s453 = scalar_select %p450, %s451, %s452
      %p456 = pneg %p450
      %p457 = scmp.eq.s32.totalorder %s27, 1
      %p458 = por %p456, %p457
      %p459 = scmp.ne.s32.totalorder %s451, %s454
      %p460 = scmp.eq.s32.totalorder %s27, 0
      %p461 = por %p459, %p460
      %p462 = scmp.ne.s32.totalorder %s451, %s454
      %p463 = scmp.eq.s32.totalorder %s32, 1
      %p464 = por %p462, %p463
      %p465 = scmp.ne.s32.totalorder %s454, %s455
      %p466 = scmp.eq.s32.totalorder %s32, 0
      %p467 = por %p465, %p466
      %p468 = scmp.ne.s32.totalorder %s454, %s455
      %p469 = scmp.eq.s32.totalorder %s33, 1
      %p470 = por %p468, %p469
      %p472 = scmp.ne.s32.totalorder %s455, %s471
      %p473 = scmp.eq.s32.totalorder %s33, 0
      %p474 = por %p472, %p473
      %p475 = scmp.le.s32.totalorder 1, %s27
      %p476 = scmp.lt.s32.totalorder %s27, 3
      %p477 = pnand %p475, %p476
      %p478 = pneg %p477
      // Predicated region
      $region9: #{forward.1} parent=5 // pred_check
        _
      $region10: #{forward.1} parent=5 // pred_check_branch
        %480 = sbr.rel (%p477) target = $region12
      $region11: #{forward.1} parent=5 // pred_region
        %s481 = ssub.s32 %s27, 1
        // Predicated region
        $region13: #{forward.1} parent=11 // pred_check
          %p482 = pneg %p74
        $region14: #{forward.1} parent=11 // pred_check_branch
          %484 = sbr.rel (%p482) target = $region16
        $region15: #{forward.1} parent=11 // pred_region
          _
        $region16: #{forward.1} parent=11 // pred_fallthru
          _
        // Predicated region
        $region17: #{forward.1} parent=11 // pred_check
          %p485 = pneg %p95
        $region18: #{forward.1} parent=11 // pred_check_branch
          %487 = sbr.rel (%p485) target = $region20
        $region19: #{forward.1} parent=11 // pred_region
          _
        $region20: #{forward.1} parent=11 // pred_fallthru
          _
        // Predicated region
        $region21: #{forward.1} parent=11 // pred_check
          %p488 = pneg %p116
        $region22: #{forward.1} parent=11 // pred_check_branch
          %490 = sbr.rel (%p488) target = $region24
        $region23: #{forward.1} parent=11 // pred_region
          _
        $region24: #{forward.1} parent=11 // pred_fallthru
          _
        // Predicated region
        $region25: #{forward.1} parent=11 // pred_check
          %p491 = pneg %p137
        $region26: #{forward.1} parent=11 // pred_check_branch
          %493 = sbr.rel (%p491) target = $region28
        $region27: #{forward.1} parent=11 // pred_region
          _
        $region28: #{forward.1} parent=11 // pred_fallthru
          _
        // Predicated region
        $region29: #{forward.1} parent=11 // pred_check
          %p494 = pneg %p158
        $region30: #{forward.1} parent=11 // pred_check_branch
          %496 = sbr.rel (%p494) target = $region32
        $region31: #{forward.1} parent=11 // pred_region
          _
        $region32: #{forward.1} parent=11 // pred_fallthru
          _
        // Predicated region
        $region33: #{forward.1} parent=11 // pred_check
          %p497 = pneg %p179
        $region34: #{forward.1} parent=11 // pred_check_branch
          %499 = sbr.rel (%p497) target = $region36
        $region35: #{forward.1} parent=11 // pred_region
          _
        $region36: #{forward.1} parent=11 // pred_fallthru
          _
        // Predicated region
        $region37: #{forward.1} parent=11 // pred_check
          %p500 = pneg %p200
        $region38: #{forward.1} parent=11 // pred_check_branch
          %502 = sbr.rel (%p500) target = $region40
        $region39: #{forward.1} parent=11 // pred_region
          _
        $region40: #{forward.1} parent=11 // pred_fallthru
          _
        // Predicated region
        $region41: #{forward.1} parent=11 // pred_check
          %p503 = pneg %p221
        $region42: #{forward.1} parent=11 // pred_check_branch
          %505 = sbr.rel (%p503) target = $region44
        $region43: #{forward.1} parent=11 // pred_region
          _
        $region44: #{forward.1} parent=11 // pred_fallthru
          _
        // Predicated region
        $region45: #{forward.1} parent=11 // pred_check
          %p506 = pneg %p242
        $region46: #{forward.1} parent=11 // pred_check_branch
          %508 = sbr.rel (%p506) target = $region48
        $region47: #{forward.1} parent=11 // pred_region
          _
        $region48: #{forward.1} parent=11 // pred_fallthru
          _
        // Predicated region
        $region49: #{forward.1} parent=11 // pred_check
          %p509 = pneg %p263
        $region50: #{forward.1} parent=11 // pred_check_branch
          %511 = sbr.rel (%p509) target = $region52
        $region51: #{forward.1} parent=11 // pred_region
          _
        $region52: #{forward.1} parent=11 // pred_fallthru
          _
        // Predicated region
        $region53: #{forward.1} parent=11 // pred_check
          %p512 = pneg %p284
        $region54: #{forward.1} parent=11 // pred_check_branch
          %514 = sbr.rel (%p512) target = $region56
        $region55: #{forward.1} parent=11 // pred_region
          _
        $region56: #{forward.1} parent=11 // pred_fallthru
          _
        // Predicated region
        $region57: #{forward.1} parent=11 // pred_check
          %p515 = pneg %p305
        $region58: #{forward.1} parent=11 // pred_check_branch
          %517 = sbr.rel (%p515) target = $region60
        $region59: #{forward.1} parent=11 // pred_region
          _
        $region60: #{forward.1} parent=11 // pred_fallthru
          _
        // Predicated region
        $region61: #{forward.1} parent=11 // pred_check
          %p518 = pneg %p326
        $region62: #{forward.1} parent=11 // pred_check_branch
          %520 = sbr.rel (%p518) target = $region64
        $region63: #{forward.1} parent=11 // pred_region
          %s522 = ssub.s32 4608, 4608
          %523 = vsyncadd [#allocation3], %s522
          %s524 = sshll.u32 [#allocation2], 4
          %s525 = int_to_ptr.vmem [resolvable:$true] %s524
          %530 = dma.hbm_to_vmem [thread:$0]  %s13, 4608, %s525, [#allocation3], 64, 64, 4
        $region64: #{forward.1} parent=11 // pred_fallthru
          _
        // Predicated region
        $region65: #{forward.1} parent=11 // pred_check
          %p531 = pneg %p347
        $region66: #{forward.1} parent=11 // pred_check_branch
          %533 = sbr.rel (%p531) target = $region68
        $region67: #{forward.1} parent=11 // pred_region
          _
        $region68: #{forward.1} parent=11 // pred_fallthru
          _
        // Predicated region
        $region69: #{forward.1} parent=11 // pred_check
          %p534 = pneg %p368
        $region70: #{forward.1} parent=11 // pred_check_branch
          %536 = sbr.rel (%p534) target = $region72
        $region71: #{forward.1} parent=11 // pred_region
          _
        $region72: #{forward.1} parent=11 // pred_fallthru
          _
        // Predicated region
        $region73: #{forward.1} parent=11 // pred_check
          %p537 = pneg %p389
        $region74: #{forward.1} parent=11 // pred_check_branch
          %539 = sbr.rel (%p537) target = $region76
        $region75: #{forward.1} parent=11 // pred_region
          _
        $region76: #{forward.1} parent=11 // pred_fallthru
          _
      $region12: #{forward.1} parent=5 // pred_fallthru
        _
      %p540 = scmp.lt.s32.totalorder %s27, 2
      // Predicated region
      $region77: #{forward.1} parent=5 // pred_check
        %p541 = pneg %p540
      $region78: #{forward.1} parent=5 // pred_check_branch
        %543 = sbr.rel (%p541) target = $region80
      $region79: #{forward.1} parent=5 // pred_region
        // Predicated region
        $region81: #{forward.1} parent=79 // pred_check
          %p544 = pneg %p47
        $region82: #{forward.1} parent=79 // pred_check_branch
          %546 = sbr.rel (%p544) target = $region84
        $region83: #{forward.1} parent=79 // pred_region
          %p547 = scmp.lt.s32.totalorder %s27, 1
          %s548 = scalar_select %p547, %s27, 1
          %s549 = scalar_lea.vmem %s0, %s548
        $region84: #{forward.1} parent=79 // pred_fallthru
          _
      $region80: #{forward.1} parent=5 // pred_fallthru
        _
      %p550 = scmp.le.s32.totalorder 1, %s27
      %p551 = scmp.lt.s32.totalorder %s27, 3
      %p552 = pnand %p550, %p551
      %p553 = pneg %p552
      // Predicated region
      $region85: #{forward.1} parent=5 // pred_check
        _
      $region86: #{forward.1} parent=5 // pred_check_branch
        %555 = sbr.rel (%p552) target = $region88
      $region87: #{forward.1} parent=5 // pred_region
        %s556 = ssub.s32 %s27, 1
        // Predicated region
        $region89: #{forward.1} parent=87 // pred_check
          %p557 = pneg %p326
        $region90: #{forward.1} parent=87 // pred_check_branch
          %559 = sbr.rel (%p557) target = $region92
        $region91: #{forward.1} parent=87 // pred_region
          %560 = dma.done [#allocation3], 4608
        $region92: #{forward.1} parent=87 // pred_fallthru
          _
        %p561 = scmp.lt.s32.totalorder %s32, 1
        %s562 = scalar_select %p561, %s32, 1
        %s563 = scalar_lea.vmem %s0, %s562
        %p564 = pneg %p53
        %p565 = pneg %p50
        %p566 = pneg %p74
        %p567 = pneg %p71
        %p568 = pneg %p95
        %p569 = pneg %p92
        %p570 = pneg %p116
        %p571 = pneg %p113
        %p572 = pneg %p137
        %p573 = pneg %p134
        %p574 = pneg %p158
        %p575 = pneg %p155
        %p576 = pneg %p179
        %p577 = pneg %p176
        %p578 = pneg %p200
        %p579 = pneg %p197
        %p580 = pneg %p221
        %p581 = pneg %p218
        %p582 = pneg %p242
        %p583 = pneg %p239
        %p584 = pneg %p263
        %p585 = pneg %p260
        %p586 = pneg %p284
        %p587 = pneg %p281
        %p588 = pneg %p305
        %p589 = pneg %p302
        %p590 = pneg %p326
        %p591 = pneg %p323
        %p592 = pneg %p347
        %p593 = pneg %p344
        %p594 = pneg %p368
        %p595 = pneg %p365
        %p596 = pneg %p389
        %p597 = pneg %p386
        %p598 = pneg %p415
        %p599 = pneg %p412
        %p600 = scmp.lt.s32.totalorder %s32, 1
        %s601 = scalar_select %p600, %s32, 1
        %s602 = smul.addr %s601, 2
        %s603 = scalar_lea.vmem %s17, %s602
        %p604 = pneg %p441
        %p605 = pneg %p438
        %p606 = scmp.lt.s32.totalorder %s32, 1
        %s607 = scalar_select %p606, %s32, 1
        %s608 = smul.addr %s607, 4
        %s609 = scalar_lea.vmem %s18, %s608
        %p610 = pneg %p467
        %p611 = pneg %p464
        %p612 = scmp.lt.s32.totalorder %s32, 1
        %s613 = scalar_select %p612, %s32, 1
        %s614 = smul.addr %s613, 8
        %s615 = scalar_lea.vmem %s19, %s614
        %p616 = scmp.lt.s32.totalorder %s32, 1
        %s617 = scalar_select %p616, %s32, 1
        %s618 = scalar_lea.vmem %s0, %s617
        %p619 = scmp.lt.s32.totalorder %s32, 1
        %s620 = scalar_select %p619, %s32, 1
        %s621 = smul.addr %s620, 2
        %s622 = scalar_lea.vmem %s17, %s621
        %p623 = scmp.lt.s32.totalorder %s32, 1
        %s624 = scalar_select %p623, %s32, 1
        %s625 = smul.addr %s624, 4
        %s626 = scalar_lea.vmem %s18, %s625
        %p627 = scmp.lt.s32.totalorder %s32, 1
        %s628 = scalar_select %p627, %s32, 1
        %s629 = smul.addr %s628, 8
        %s630 = scalar_lea.vmem %s19, %s629
        %v632 = vld [vmem:[%s618] sm:$0x1]
        %vm633 = vcmask 1040384
        %v634 = vsel %vm633, %v632, 0.0
        %v635 = vpack.c.bf16 0.0, %v634
        %v636 = vld [vmem:[%s1] sm:$0xff]
        %v637 = vld [vmem:[%s1 + $0x8] sm:$0xff]
        %v638 = vld [vmem:[%s2] sm:$0x3]
        %v640 = vlaneseq
        %v641 = vshrl.u32 %v640, 7
        %v642 = vsub.s32 0, %v641
        %v643 = vrot.slane %v638, %v642
        %v644 = vlaneseq
        %v645 = vshrl.u32 %v644, 7
        %v646 = vsub.s32 1, %v645
        %v647 = vrot.slane %v638, %v646
        %v652 = vunpack.c.l.b16 %v636
        %v653 = vunpack.c.h.b16 %v636
        %v654 = vunpack.c.l.b16 %v637
        %v655 = vunpack.c.h.b16 %v637
        %v656 = vpack.c.b16 %v654, %v652
        %v657 = vpack.c.b16 %v655, %v653
        %vm660 = vcmask 130048
        %v662 = vsel %vm660, %v635, 0
        %664 = vmatprep.subr.bf16.mxu0 0
        %665 = vmatpush1.bf16.msra.mxu0 0
        %666 = vmatprep.subr.bf16.mxu0 0
        %667 = vmatpush1.bf16.msra.mxu0 0
        %668 = vmatprep.subr.bf16.mxu0 0
        %669 = vmatpush1.bf16.msra.mxu0 0
        %670 = vmatprep.subr.bf16.mxu0 0
        %671 = vmatpush1.bf16.msra.mxu0 0
        %672 = vmatprep.subr.bf16.mxu0 0
        %673 = vmatpush1.bf16.msra.mxu0 0
        %674 = vmatprep.subr.bf16.mxu0 0
        %675 = vmatpush1.bf16.msra.mxu0 0
        %676 = vmatprep.subr.bf16.mxu0 0
        %677 = vmatpush1.bf16.msra.mxu0 0
        %678 = vmatprep.subr.bf16.mxu0 %v657
        %679 = vmatpush1.bf16.msra.mxu0 %v656
        %680 = vmatprep.subr.bf16.mxu0 0
        %681 = vmatpush2.bf16.msra.mxu0 0
        %682 = vmatprep.subr.bf16.mxu0 0
        %683 = vmatpush2.bf16.msra.mxu0 0
        %684 = vmatprep.subr.bf16.mxu0 0
        %685 = vmatpush2.bf16.msra.mxu0 0
        %686 = vmatprep.subr.bf16.mxu0 0
        %687 = vmatpush2.bf16.msra.mxu0 0
        %688 = vmatprep.subr.bf16.mxu0 0
        %689 = vmatpush2.bf16.msra.mxu0 0
        %690 = vmatprep.subr.bf16.mxu0 0
        %691 = vmatpush2.bf16.msra.mxu0 0
        %692 = vmatprep.subr.bf16.mxu0 0
        %693 = vmatpush2.bf16.msra.mxu0 0
        %694 = vmatprep.subr.bf16.mxu0 0
        %695 = vmatpush2.bf16.msra.mxu0 0
        %696 = vmatprep.mubr.bf16.mxu0 0
        %697 = vmatmul.mubr.bf16.gmra.mxu0 %v662
        %v698 = vpop.f32.mrf.mxu0
        %v699 = vadd.f32 %v643, %v698
        %v700 = vpop.f32.mrf.mxu0
        %v701 = vadd.f32 %v647, %v700
        %v702 = vpop.f32.mrf.mxu0
        %v703 = vadd.f32 %v643, %v702
        %v704 = vpop.f32.mrf.mxu0
        %v705 = vadd.f32 %v647, %v704
        %706 = vdwg.mxu0
        %v707 = vmul.f32 %v699, %v699
        %v708 = vmul.f32 %v701, %v701
        %v709 = vmul.f32 %v703, %v703
        %v710 = vmul.f32 %v705, %v705
        %v711 = vmul.f32 %v699, %v707
        %v712 = vmul.f32 %v701, %v708
        %v713 = vmul.f32 %v703, %v709
        %v714 = vmul.f32 %v705, %v710
        %v715 = vmul.f32 %v711, 0.044715
        %v716 = vmul.f32 %v712, 0.044715
        %v717 = vmul.f32 %v713, 0.044715
        %v718 = vmul.f32 %v714, 0.044715
        %v719 = vadd.f32 %v699, %v715
        %v720 = vadd.f32 %v701, %v716
        %v721 = vadd.f32 %v703, %v717
        %v722 = vadd.f32 %v705, %v718
        %v723 = vmul.f32 %v719, 0.7978846
        %v724 = vmul.f32 %v720, 0.7978846
        %v725 = vmul.f32 %v721, 0.7978846
        %v726 = vmul.f32 %v722, 0.7978846
        %v727 = vtanh.pop %v723
        %v728 = vtanh.pop %v724
        %v729 = vtanh.pop %v725
        %v730 = vtanh.pop %v726
        %v731 = vadd.f32 %v727, 1.0
        %v732 = vadd.f32 %v728, 1.0
        %v733 = vadd.f32 %v729, 1.0
        %v734 = vadd.f32 %v730, 1.0
        %v735 = vmul.f32 %v731, 0.5
        %v736 = vmul.f32 %v732, 0.5
        %v737 = vmul.f32 %v733, 0.5
        %v738 = vmul.f32 %v734, 0.5
        %v739 = vmul.f32 %v699, %v735
        %v740 = vmul.f32 %v701, %v736
        %v741 = vmul.f32 %v703, %v737
        %v742 = vmul.f32 %v705, %v738
        %v743 = vpack.c.bf16 %v741, %v739
        %v744 = vpack.c.bf16 %v742, %v740
        %v745 = vld [vmem:[%s3] sm:$0xf]
        %v746 = vld [vmem:[%s3 + $0x4] sm:$0xf]
        %v747 = vld [vmem:[%s3 + $0x8] sm:$0xf]
        %v748 = vld [vmem:[%s3 + $0xc] sm:$0xf]
        %v749 = vld [vmem:[%s3 + $0x10] sm:$0xf]
        %v750 = vld [vmem:[%s3 + $0x14] sm:$0xf]
        %v751 = vld [vmem:[%s3 + $0x18] sm:$0xf]
        %v752 = vld [vmem:[%s3 + $0x1c] sm:$0xf]
        %v753 = vld [vmem:[%s3 + $0x20] sm:$0xf]
        %v754 = vld [vmem:[%s3 + $0x24] sm:$0xf]
        %v755 = vld [vmem:[%s3 + $0x28] sm:$0xf]
        %v756 = vld [vmem:[%s3 + $0x2c] sm:$0xf]
        %v757 = vld [vmem:[%s3 + $0x30] sm:$0xf]
        %v758 = vld [vmem:[%s3 + $0x34] sm:$0xf]
        %v759 = vld [vmem:[%s3 + $0x38] sm:$0xf]
        %v760 = vld [vmem:[%s3 + $0x3c] sm:$0xf]
        %v761 = vld [vmem:[%s3 + $0x40] sm:$0xf]
        %v762 = vld [vmem:[%s3 + $0x44] sm:$0xf]
        %v763 = vld [vmem:[%s3 + $0x48] sm:$0xf]
        %v764 = vld [vmem:[%s3 + $0x4c] sm:$0xf]
        %v765 = vld [vmem:[%s3 + $0x50] sm:$0xf]
        %v766 = vld [vmem:[%s3 + $0x54] sm:$0xf]
        %v767 = vld [vmem:[%s3 + $0x58] sm:$0xf]
        %v768 = vld [vmem:[%s3 + $0x5c] sm:$0xf]
        %v769 = vld [vmem:[%s3 + $0x60] sm:$0xf]
        %v770 = vld [vmem:[%s3 + $0x64] sm:$0xf]
        %v771 = vld [vmem:[%s3 + $0x68] sm:$0xf]
        %v772 = vld [vmem:[%s3 + $0x6c] sm:$0xf]
        %v773 = vld [vmem:[%s3 + $0x70] sm:$0xf]
        %v774 = vld [vmem:[%s3 + $0x74] sm:$0xf]
        %v775 = vld [vmem:[%s3 + $0x78] sm:$0xf]
        %v776 = vld [vmem:[%s3 + $0x7c] sm:$0xf]
        %v777 = vld [vmem:[%s4] sm:$0x1]
        %v779 = vlaneseq
        %v780 = vshrl.u32 %v779, 7
        %v781 = vsub.s32 0, %v780
        %v782 = vrot.slane %v777, %v781
        %v816 = vunpack.c.l.b16 %v745
        %v817 = vunpack.c.l.b16 %v746
        %v818 = vunpack.c.l.b16 %v747
        %v819 = vunpack.c.l.b16 %v748
        %v820 = vunpack.c.l.b16 %v749
        %v821 = vunpack.c.l.b16 %v750
        %v822 = vunpack.c.l.b16 %v751
        %v823 = vunpack.c.l.b16 %v752
        %v824 = vunpack.c.l.b16 %v753
        %v825 = vunpack.c.l.b16 %v754
        %v826 = vunpack.c.l.b16 %v755
        %v827 = vunpack.c.l.b16 %v756
        %v828 = vunpack.c.l.b16 %v757
        %v829 = vunpack.c.l.b16 %v758
        %v830 = vunpack.c.l.b16 %v759
        %v831 = vunpack.c.l.b16 %v760
        %v832 = vunpack.c.l.b16 %v761
        %v833 = vunpack.c.l.b16 %v762
        %v834 = vunpack.c.l.b16 %v763
        %v835 = vunpack.c.l.b16 %v764
        %v836 = vunpack.c.l.b16 %v765
        %v837 = vunpack.c.l.b16 %v766
        %v838 = vunpack.c.l.b16 %v767
        %v839 = vunpack.c.l.b16 %v768
        %v840 = vunpack.c.l.b16 %v769
        %v841 = vunpack.c.l.b16 %v770
        %v842 = vunpack.c.l.b16 %v771
        %v843 = vunpack.c.l.b16 %v772
        %v844 = vunpack.c.l.b16 %v773
        %v845 = vunpack.c.l.b16 %v774
        %v846 = vunpack.c.l.b16 %v775
        %v847 = vunpack.c.l.b16 %v776
        %v848 = vpack.c.b16 %v817, %v816
        %v849 = vpack.c.b16 %v819, %v818
        %v850 = vpack.c.b16 %v821, %v820
        %v851 = vpack.c.b16 %v823, %v822
        %v852 = vpack.c.b16 %v825, %v824
        %v853 = vpack.c.b16 %v827, %v826
        %v854 = vpack.c.b16 %v829, %v828
        %v855 = vpack.c.b16 %v831, %v830
        %v856 = vpack.c.b16 %v833, %v832
        %v857 = vpack.c.b16 %v835, %v834
        %v858 = vpack.c.b16 %v837, %v836
        %v859 = vpack.c.b16 %v839, %v838
        %v860 = vpack.c.b16 %v841, %v840
        %v861 = vpack.c.b16 %v843, %v842
        %v862 = vpack.c.b16 %v845, %v844
        %v863 = vpack.c.b16 %v847, %v846
        %880 = vmatprep.subr.bf16.mxu0 0
        %881 = vmatpush1.bf16.msra.mxu0 %v855
        %882 = vmatprep.subr.bf16.mxu0 0
        %883 = vmatpush1.bf16.msra.mxu0 %v854
        %884 = vmatprep.subr.bf16.mxu0 0
        %885 = vmatpush1.bf16.msra.mxu0 %v853
        %886 = vmatprep.subr.bf16.mxu0 0
        %887 = vmatpush1.bf16.msra.mxu0 %v852
        %888 = vmatprep.subr.bf16.mxu0 0
        %889 = vmatpush1.bf16.msra.mxu0 %v851
        %890 = vmatprep.subr.bf16.mxu0 0
        %891 = vmatpush1.bf16.msra.mxu0 %v850
        %892 = vmatprep.subr.bf16.mxu0 0
        %893 = vmatpush1.bf16.msra.mxu0 %v849
        %894 = vmatprep.subr.bf16.mxu0 0
        %895 = vmatpush1.bf16.msra.mxu0 %v848
        %896 = vmatprep.subr.bf16.mxu0 0
        %897 = vmatpush2.bf16.msra.mxu0 %v863
        %898 = vmatprep.subr.bf16.mxu0 0
        %899 = vmatpush2.bf16.msra.mxu0 %v862
        %900 = vmatprep.subr.bf16.mxu0 0
        %901 = vmatpush2.bf16.msra.mxu0 %v861
        %902 = vmatprep.subr.bf16.mxu0 0
        %903 = vmatpush2.bf16.msra.mxu0 %v860
        %904 = vmatprep.subr.bf16.mxu0 0
        %905 = vmatpush2.bf16.msra.mxu0 %v859
        %906 = vmatprep.subr.bf16.mxu0 0
        %907 = vmatpush2.bf16.msra.mxu0 %v858
        %908 = vmatprep.subr.bf16.mxu0 0
        %909 = vmatpush2.bf16.msra.mxu0 %v857
        %910 = vmatprep.subr.bf16.mxu0 0
        %911 = vmatpush2.bf16.msra.mxu0 %v856
        %912 = vmatprep.mubr.bf16.mxu0 %v744
        %913 = vmatmul.mubr.bf16.gmra.mxu0 %v743
        %v914 = vpop.f32.mrf.mxu0
        %v915 = vadd.f32 %v782, %v914
        %v916 = vpop.f32.mrf.mxu0
        %v917 = vpop.f32.mrf.mxu0
        %v918 = vpop.f32.mrf.mxu0
        %919 = vdwg.mxu0
        %v920 = vmul.f32 %v915, %v915
        %v921 = vmul.f32 %v915, %v920
        %v922 = vmul.f32 %v921, 0.044715
        %v923 = vadd.f32 %v915, %v922
        %v924 = vmul.f32 %v923, 0.7978846
        %v925 = vtanh.pop %v924
        %v926 = vadd.f32 %v925, 1.0
        %v927 = vmul.f32 %v926, 0.5
        %v928 = vmul.f32 %v915, %v927
        %v929 = vld [vmem:[%s5] sm:$0xf]
        %v930 = vld [vmem:[%s5 + $0x4] sm:$0xf]
        %v931 = vld [vmem:[%s6] sm:$0x1]
        %v933 = vlaneseq
        %v934 = vshrl.u32 %v933, 7
        %v935 = vsub.s32 0, %v934
        %v936 = vrot.slane %v931, %v935
        %v940 = vunpack.c.l.b16 %v929
        %v941 = vunpack.c.l.b16 %v930
        %v942 = vpack.c.b16 %v941, %v940
        %944 = vmatprep.subr.bf16.mxu0 0
        %945 = vmatpush1.bf16.msra.mxu0 0
        %946 = vmatprep.subr.bf16.mxu0 0
        %947 = vmatpush1.bf16.msra.mxu0 0
        %948 = vmatprep.subr.bf16.mxu0 0
        %949 = vmatpush1.bf16.msra.mxu0 0
        %950 = vmatprep.subr.bf16.mxu0 0
        %951 = vmatpush1.bf16.msra.mxu0 0
        %952 = vmatprep.subr.bf16.mxu0 0
        %953 = vmatpush1.bf16.msra.mxu0 0
        %954 = vmatprep.subr.bf16.mxu0 0
        %955 = vmatpush1.bf16.msra.mxu0 0
        %956 = vmatprep.subr.bf16.mxu0 0
        %957 = vmatpush1.bf16.msra.mxu0 0
        %958 = vmatprep.subr.bf16.mxu0 0
        %959 = vmatpush1.bf16.msra.mxu0 %v942
        %960 = vmatprep.subr.bf16.mxu0 0
        %961 = vmatpush2.bf16.msra.mxu0 0
        %962 = vmatprep.subr.bf16.mxu0 0
        %963 = vmatpush2.bf16.msra.mxu0 0
        %964 = vmatprep.subr.bf16.mxu0 0
        %965 = vmatpush2.bf16.msra.mxu0 0
        %966 = vmatprep.subr.bf16.mxu0 0
        %967 = vmatpush2.bf16.msra.mxu0 0
        %968 = vmatprep.subr.bf16.mxu0 0
        %969 = vmatpush2.bf16.msra.mxu0 0
        %970 = vmatprep.subr.bf16.mxu0 0
        %971 = vmatpush2.bf16.msra.mxu0 0
        %972 = vmatprep.subr.bf16.mxu0 0
        %973 = vmatpush2.bf16.msra.mxu0 0
        %974 = vmatprep.subr.bf16.mxu0 0
        %975 = vmatpush2.bf16.msra.mxu0 0
        %976 = vmatprep.mubr.bf16.mxu0 0
        %977 = vmatmul.mubr.bf16.gmra.mxu0 %v662
        %v978 = vpop.f32.mrf.mxu0
        %v979 = vadd.f32 %v936, %v978
        %v980 = vpop.f32.mrf.mxu0
        %v981 = vpop.f32.mrf.mxu0
        %v982 = vadd.f32 %v936, %v981
        %v983 = vpop.f32.mrf.mxu0
        %984 = vdwg.mxu0
        %v985 = vmul.f32 %v979, %v979
        %v986 = vmul.f32 %v982, %v982
        %v987 = vmul.f32 %v979, %v985
        %v988 = vmul.f32 %v982, %v986
        %v989 = vmul.f32 %v987, 0.044715
        %v990 = vmul.f32 %v988, 0.044715
        %v991 = vadd.f32 %v979, %v989
        %v992 = vadd.f32 %v982, %v990
        %v993 = vmul.f32 %v991, 0.7978846
        %v994 = vmul.f32 %v992, 0.7978846
        %v995 = vtanh.pop %v993
        %v996 = vtanh.pop %v994
        %v997 = vadd.f32 %v995, 1.0
        %v998 = vadd.f32 %v996, 1.0
        %v999 = vmul.f32 %v997, 0.5
        %v1000 = vmul.f32 %v998, 0.5
        %v1001 = vmul.f32 %v979, %v999
        %v1002 = vmul.f32 %v982, %v1000
        %v1003 = vpack.c.bf16 %v1002, %v1001
        %v1004 = vld [vmem:[%s7] sm:$0xf]
        %v1005 = vld [vmem:[%s7 + $0x4] sm:$0xf]
        %v1006 = vld [vmem:[%s7 + $0x8] sm:$0xf]
        %v1007 = vld [vmem:[%s7 + $0xc] sm:$0xf]
        %v1008 = vld [vmem:[%s8] sm:$0x1]
        %v1010 = vlaneseq
        %v1011 = vshrl.u32 %v1010, 7
        %v1012 = vsub.s32 0, %v1011
        %v1013 = vrot.slane %v1008, %v1012
        %v1019 = vunpack.c.l.b16 %v1004
        %v1020 = vunpack.c.l.b16 %v1005
        %v1021 = vunpack.c.l.b16 %v1006
        %v1022 = vunpack.c.l.b16 %v1007
        %v1023 = vpack.c.b16 %v1020, %v1019
        %v1024 = vpack.c.b16 %v1022, %v1021
        %vm1027 = vcmask 261120
        %v1029 = vsel %vm1027, %v1003, 0
        %1031 = vmatprep.subr.bf16.mxu0 0
        %1032 = vmatpush1.bf16.msra.mxu0 0
        %1033 = vmatprep.subr.bf16.mxu0 0
        %1034 = vmatpush1.bf16.msra.mxu0 0
        %1035 = vmatprep.subr.bf16.mxu0 0
        %1036 = vmatpush1.bf16.msra.mxu0 0
        %1037 = vmatprep.subr.bf16.mxu0 0
        %1038 = vmatpush1.bf16.msra.mxu0 0
        %1039 = vmatprep.subr.bf16.mxu0 0
        %1040 = vmatpush1.bf16.msra.mxu0 0
        %1041 = vmatprep.subr.bf16.mxu0 0
        %1042 = vmatpush1.bf16.msra.mxu0 0
        %1043 = vmatprep.subr.bf16.mxu0 0
        %1044 = vmatpush1.bf16.msra.mxu0 %v1024
        %1045 = vmatprep.subr.bf16.mxu0 0
        %1046 = vmatpush1.bf16.msra.mxu0 %v1023
        %1047 = vmatprep.subr.bf16.mxu0 0
        %1048 = vmatpush2.bf16.msra.mxu0 0
        %1049 = vmatprep.subr.bf16.mxu0 0
        %1050 = vmatpush2.bf16.msra.mxu0 0
        %1051 = vmatprep.subr.bf16.mxu0 0
        %1052 = vmatpush2.bf16.msra.mxu0 0
        %1053 = vmatprep.subr.bf16.mxu0 0
        %1054 = vmatpush2.bf16.msra.mxu0 0
        %1055 = vmatprep.subr.bf16.mxu0 0
        %1056 = vmatpush2.bf16.msra.mxu0 0
        %1057 = vmatprep.subr.bf16.mxu0 0
        %1058 = vmatpush2.bf16.msra.mxu0 0
        %1059 = vmatprep.subr.bf16.mxu0 0
        %1060 = vmatpush2.bf16.msra.mxu0 0
        %1061 = vmatprep.subr.bf16.mxu0 0
        %1062 = vmatpush2.bf16.msra.mxu0 0
        %1063 = vmatprep.mubr.bf16.mxu0 0
        %1064 = vmatmul.mubr.bf16.gmra.mxu0 %v1029
        %v1065 = vpop.f32.mrf.mxu0
        %v1066 = vadd.f32 %v1013, %v1065
        %v1067 = vpop.f32.mrf.mxu0
        %v1068 = vpop.f32.mrf.mxu0
        %v1069 = vadd.f32 %v1013, %v1068
        %v1070 = vpop.f32.mrf.mxu0
        %1071 = vdwg.mxu0
        %v1072 = vmul.f32 %v1066, %v1066
        %v1073 = vmul.f32 %v1069, %v1069
        %v1074 = vmul.f32 %v1066, %v1072
        %v1075 = vmul.f32 %v1069, %v1073
        %v1076 = vmul.f32 %v1074, 0.044715
        %v1077 = vmul.f32 %v1075, 0.044715
        %v1078 = vadd.f32 %v1066, %v1076
        %v1079 = vadd.f32 %v1069, %v1077
        %v1080 = vmul.f32 %v1078, 0.7978846
        %v1081 = vmul.f32 %v1079, 0.7978846
        %v1082 = vtanh.pop %v1080
        %v1083 = vtanh.pop %v1081
        %v1084 = vadd.f32 %v1082, 1.0
        %v1085 = vadd.f32 %v1083, 1.0
        %v1086 = vmul.f32 %v1084, 0.5
        %v1087 = vmul.f32 %v1085, 0.5
        %v1088 = vmul.f32 %v1066, %v1086
        %v1089 = vmul.f32 %v1069, %v1087
        %v1090 = vpack.c.bf16 %v1089, %v1088
        %v1091 = vld [vmem:[%s9] sm:$0xff]
        %v1092 = vld [vmem:[%s9 + $0x8] sm:$0xff]
        %v1093 = vld [vmem:[%s9 + $0x10] sm:$0xff]
        %v1094 = vld [vmem:[%s9 + $0x18] sm:$0xff]
        %v1095 = vld [vmem:[%s10] sm:$0xf]
        %v1097 = vlaneseq
        %v1098 = vshrl.u32 %v1097, 7
        %v1099 = vsub.s32 0, %v1098
        %v1100 = vrot.slane %v1095, %v1099
        %v1101 = vlaneseq
        %v1102 = vshrl.u32 %v1101, 7
        %v1103 = vsub.s32 1, %v1102
        %v1104 = vrot.slane %v1095, %v1103
        %v1105 = vlaneseq
        %v1106 = vshrl.u32 %v1105, 7
        %v1107 = vsub.s32 2, %v1106
        %v1108 = vrot.slane %v1095, %v1107
        %v1109 = vlaneseq
        %v1110 = vshrl.u32 %v1109, 7
        %v1111 = vsub.s32 3, %v1110
        %v1112 = vrot.slane %v1095, %v1111
        %v1121 = vunpack.c.l.b16 %v1091
        %v1122 = vunpack.c.h.b16 %v1091
        %v1123 = vunpack.c.l.b16 %v1092
        %v1124 = vunpack.c.h.b16 %v1092
        %v1125 = vunpack.c.l.b16 %v1093
        %v1126 = vunpack.c.h.b16 %v1093
        %v1127 = vunpack.c.l.b16 %v1094
        %v1128 = vunpack.c.h.b16 %v1094
        %v1129 = vpack.c.b16 %v1125, %v1121
        %v1130 = vpack.c.b16 %v1126, %v1122
        %v1131 = vpack.c.b16 %v1127, %v1123
        %v1132 = vpack.c.b16 %v1128, %v1124
        %v1138 = vsel %vm660, %v1090, 0
        %1140 = vmatprep.subr.bf16.mxu0 0
        %1141 = vmatpush1.bf16.msra.mxu0 0
        %1142 = vmatprep.subr.bf16.mxu0 0
        %1143 = vmatpush1.bf16.msra.mxu0 0
        %1144 = vmatprep.subr.bf16.mxu0 0
        %1145 = vmatpush1.bf16.msra.mxu0 0
        %1146 = vmatprep.subr.bf16.mxu0 0
        %1147 = vmatpush1.bf16.msra.mxu0 0
        %1148 = vmatprep.subr.bf16.mxu0 0
        %1149 = vmatpush1.bf16.msra.mxu0 0
        %1150 = vmatprep.subr.bf16.mxu0 0
        %1151 = vmatpush1.bf16.msra.mxu0 0
        %1152 = vmatprep.subr.bf16.mxu0 0
        %1153 = vmatpush1.bf16.msra.mxu0 0
        %1154 = vmatprep.subr.bf16.mxu0 %v1130
        %1155 = vmatpush1.bf16.msra.mxu0 %v1129
        %1156 = vmatprep.subr.bf16.mxu0 0
        %1157 = vmatpush2.bf16.msra.mxu0 0
        %1158 = vmatprep.subr.bf16.mxu0 0
        %1159 = vmatpush2.bf16.msra.mxu0 0
        %1160 = vmatprep.subr.bf16.mxu0 0
        %1161 = vmatpush2.bf16.msra.mxu0 0
        %1162 = vmatprep.subr.bf16.mxu0 0
        %1163 = vmatpush2.bf16.msra.mxu0 0
        %1164 = vmatprep.subr.bf16.mxu0 0
        %1165 = vmatpush2.bf16.msra.mxu0 0
        %1166 = vmatprep.subr.bf16.mxu0 0
        %1167 = vmatpush2.bf16.msra.mxu0 0
        %1168 = vmatprep.subr.bf16.mxu0 0
        %1169 = vmatpush2.bf16.msra.mxu0 0
        %1170 = vmatprep.subr.bf16.mxu0 0
        %1171 = vmatpush2.bf16.msra.mxu0 0
        %1172 = vmatprep.mubr.bf16.mxu0 0
        %1173 = vmatmul.mubr.bf16.gmra.mxu0 %v1138
        %v1174 = vpop.f32.mrf.mxu0
        %v1175 = vadd.f32 %v1100, %v1174
        %v1176 = vpop.f32.mrf.mxu0
        %v1177 = vadd.f32 %v1104, %v1176
        %v1178 = vpop.f32.mrf.mxu0
        %v1179 = vpop.f32.mrf.mxu0
        %1180 = vdwg.mxu0
        %1181 = vmatprep.subr.bf16.mxu0 0
        %1182 = vmatpush1.bf16.msra.mxu0 0
        %1183 = vmatprep.subr.bf16.mxu0 0
        %1184 = vmatpush1.bf16.msra.mxu0 0
        %1185 = vmatprep.subr.bf16.mxu0 0
        %1186 = vmatpush1.bf16.msra.mxu0 0
        %1187 = vmatprep.subr.bf16.mxu0 0
        %1188 = vmatpush1.bf16.msra.mxu0 0
        %1189 = vmatprep.subr.bf16.mxu0 0
        %1190 = vmatpush1.bf16.msra.mxu0 0
        %1191 = vmatprep.subr.bf16.mxu0 0
        %1192 = vmatpush1.bf16.msra.mxu0 0
        %1193 = vmatprep.subr.bf16.mxu0 0
        %1194 = vmatpush1.bf16.msra.mxu0 0
        %1195 = vmatprep.subr.bf16.mxu0 %v1132
        %1196 = vmatpush1.bf16.msra.mxu0 %v1131
        %1197 = vmatprep.subr.bf16.mxu0 0
        %1198 = vmatpush2.bf16.msra.mxu0 0
        %1199 = vmatprep.subr.bf16.mxu0 0
        %1200 = vmatpush2.bf16.msra.mxu0 0
        %1201 = vmatprep.subr.bf16.mxu0 0
        %1202 = vmatpush2.bf16.msra.mxu0 0
        %1203 = vmatprep.subr.bf16.mxu0 0
        %1204 = vmatpush2.bf16.msra.mxu0 0
        %1205 = vmatprep.subr.bf16.mxu0 0
        %1206 = vmatpush2.bf16.msra.mxu0 0
        %1207 = vmatprep.subr.bf16.mxu0 0
        %1208 = vmatpush2.bf16.msra.mxu0 0
        %1209 = vmatprep.subr.bf16.mxu0 0
        %1210 = vmatpush2.bf16.msra.mxu0 0
        %1211 = vmatprep.subr.bf16.mxu0 0
        %1212 = vmatpush2.bf16.msra.mxu0 0
        %1213 = vmatprep.mubr.bf16.mxu0 0
        %1214 = vmatmul.mubr.bf16.gmra.mxu0 %v1138
        %v1215 = vpop.f32.mrf.mxu0
        %v1216 = vadd.f32 %v1108, %v1215
        %v1217 = vpop.f32.mrf.mxu0
        %v1218 = vadd.f32 %v1112, %v1217
        %v1219 = vpop.f32.mrf.mxu0
        %v1220 = vpop.f32.mrf.mxu0
        %1221 = vdwg.mxu0
        %v1223 = vrot.slane %v928, 7
        %1224 = vrot.lane.b32.xlu0 %v1223, 96
        %v1225 = vpop.permute.xlu0 %1224
        %v1227 = vsel %vm633, %v928, %v1225
        %vm1228 = vcmask 1041408
        %v1229 = vsel %vm1228, %v1227, 0.0
        %v1230 = vpack.c.bf16 0.0, %v1229
        %v1231 = vld [vmem:[%s11] sm:$0xf]
        %v1232 = vld [vmem:[%s11 + $0x4] sm:$0xf]
        %v1233 = vld [vmem:[%s11 + $0x8] sm:$0xf]
        %v1234 = vld [vmem:[%s11 + $0xc] sm:$0xf]
        %v1235 = vld [vmem:[%s12] sm:$0x1]
        %v1237 = vlaneseq
        %v1238 = vshrl.u32 %v1237, 7
        %v1239 = vsub.s32 0, %v1238
        %v1240 = vrot.slane %v1235, %v1239
        %v1246 = vunpack.c.l.b16 %v1231
        %v1247 = vunpack.c.l.b16 %v1232
        %v1248 = vunpack.c.l.b16 %v1233
        %v1249 = vunpack.c.l.b16 %v1234
        %v1250 = vpack.c.b16 %v1247, %v1246
        %v1251 = vpack.c.b16 %v1249, %v1248
        %v1255 = vsel %vm1027, %v1230, 0
        %1257 = vmatprep.subr.bf16.mxu0 0
        %1258 = vmatpush1.bf16.msra.mxu0 0
        %1259 = vmatprep.subr.bf16.mxu0 0
        %1260 = vmatpush1.bf16.msra.mxu0 0
        %1261 = vmatprep.subr.bf16.mxu0 0
        %1262 = vmatpush1.bf16.msra.mxu0 0
        %1263 = vmatprep.subr.bf16.mxu0 0
        %1264 = vmatpush1.bf16.msra.mxu0 0
        %1265 = vmatprep.subr.bf16.mxu0 0
        %1266 = vmatpush1.bf16.msra.mxu0 0
        %1267 = vmatprep.subr.bf16.mxu0 0
        %1268 = vmatpush1.bf16.msra.mxu0 0
        %1269 = vmatprep.subr.bf16.mxu0 0
        %1270 = vmatpush1.bf16.msra.mxu0 %v1251
        %1271 = vmatprep.subr.bf16.mxu0 0
        %1272 = vmatpush1.bf16.msra.mxu0 %v1250
        %1273 = vmatprep.subr.bf16.mxu0 0
        %1274 = vmatpush2.bf16.msra.mxu0 0
        %1275 = vmatprep.subr.bf16.mxu0 0
        %1276 = vmatpush2.bf16.msra.mxu0 0
        %1277 = vmatprep.subr.bf16.mxu0 0
        %1278 = vmatpush2.bf16.msra.mxu0 0
        %1279 = vmatprep.subr.bf16.mxu0 0
        %1280 = vmatpush2.bf16.msra.mxu0 0
        %1281 = vmatprep.subr.bf16.mxu0 0
        %1282 = vmatpush2.bf16.msra.mxu0 0
        %1283 = vmatprep.subr.bf16.mxu0 0
        %1284 = vmatpush2.bf16.msra.mxu0 0
        %1285 = vmatprep.subr.bf16.mxu0 0
        %1286 = vmatpush2.bf16.msra.mxu0 0
        %1287 = vmatprep.subr.bf16.mxu0 0
        %1288 = vmatpush2.bf16.msra.mxu0 0
        %1289 = vmatprep.mubr.bf16.mxu0 0
        %1290 = vmatmul.mubr.bf16.gmra.mxu0 %v1255
        %v1291 = vpop.f32.mrf.mxu0
        %v1292 = vadd.f32 %v1240, %v1291
        %v1293 = vpop.f32.mrf.mxu0
        %v1294 = vpop.f32.mrf.mxu0
        %v1295 = vpop.f32.mrf.mxu0
        %1296 = vdwg.mxu0
        %v1297 = vlaneseq
        %v1298 = vshrl.u32 %v1297, 7
        %v1299 = vsub.s32 0, %v1298
        %v1300 = vrot.slane %v1175, %v1299
        %v1301 = vmul.f32 %v1292, %v1300
        %v1302 = vlaneseq
        %v1303 = vshrl.u32 %v1302, 7
        %v1304 = vsub.s32 0, %v1303
        %v1305 = vrot.slane %v1177, %v1304
        %v1306 = vadd.f32 %v1301, %v1305
        %v1307 = vmul.f32 %v1306, %v1306
        %v1308 = vmul.f32 %v1306, %v1307
        %v1309 = vmul.f32 %v1308, 0.044715
        %v1310 = vadd.f32 %v1306, %v1309
        %v1311 = vmul.f32 %v1310, 0.7978846
        %v1312 = vtanh.pop %v1311
        %v1313 = vadd.f32 %v1312, 1.0
        %v1314 = vmul.f32 %v1313, 0.5
        %v1315 = vmul.f32 %v1306, %v1314
        %1316 = vst [vmem:[%s622] sm:$0x3] %v1315
        %v1318 = vrot.slane %v1315, 7
        %1319 = vrot.lane.b32.xlu0 %v1318, 64
        %v1320 = vpop.permute.xlu0 %1319
        %v1323 = vrot.slane %v1315, 6
        %1324 = vrot.lane.b32.xlu0 %v1323, 64
        %v1325 = vpop.permute.xlu0 %1324
        %v1327 = vsel %vm633, %v1315, %v1320
        %v1328 = vsel %vm1228, %v1327, %v1318
        %vm1329 = vcmask 1042432
        %v1330 = vsel %vm1329, %v1328, %v1325
        %1332 = vrot.lane.b32.xlu0 %v1330, 16
        %v1333 = vpop.permute.xlu0 %1332
        %v1335 = vsel %vm660, 0.0, %v1333
        %vm1336 = vcmask 654336
        %v1337 = vsel %vm1336, %v1335, 0.0
        %v1339 = vrot.slane %v1337, 7
        %v1341 = vsel %vm633, 0.0, %v1339
        %vm1342 = vcmask 1044480
        %v1343 = vsel %vm1342, %v1341, 0.0
        %1345 = vrot.lane.b32.xlu0 %v1343, 48
        %v1346 = vpop.permute.xlu0 %1345
        %1348 = vrot.lane.b32.xlu0 %v1343, 96
        %v1349 = vpop.permute.xlu0 %1348
        %v1351 = vrot.slane %v1343, 1
        %1352 = vrot.lane.b32.xlu0 %v1351, 64
        %v1353 = vpop.permute.xlu0 %1352
        %1355 = vrot.lane.b32.xlu0 %v1351, 112
        %v1356 = vpop.permute.xlu0 %1355
        %1358 = vrot.lane.b32.xlu0 %v1351, 32
        %v1359 = vpop.permute.xlu0 %1358
        %v1361 = vrot.slane %v1343, 2
        %1363 = vrot.lane.b32.xlu0 %v1361, 48
        %v1364 = vpop.permute.xlu0 %1363
        %1366 = vrot.lane.b32.xlu0 %v1361, 96
        %v1367 = vpop.permute.xlu0 %1366
        %vm1369 = vcmask 523264
        %v1370 = vsel %vm1369, %v1343, %v1346
        %v1371 = vsel %vm1369, %v1349, %v1353
        %v1372 = vsel %vm1369, %v1356, %v1359
        %v1373 = vsel %vm1369, %v1361, %v1364
        %vm1374 = vcmask 1043456
        %v1375 = vsel %vm1374, %v1370, 0.0
        %v1376 = vsel %vm1374, %v1371, 0.0
        %v1377 = vsel %vm1374, %v1372, 0.0
        %v1378 = vsel %vm1374, %v1373, 0.0
        %v1379 = vsel %vm1374, %v1367, 0.0
        %v1380 = vpack.c.bf16 0.0, %v1375
        %v1381 = vpack.c.bf16 0.0, %v1376
        %v1382 = vpack.c.bf16 0.0, %v1377
        %v1383 = vpack.c.bf16 0.0, %v1378
        %v1384 = vpack.c.bf16 0.0, %v1379
        %v1385 = vld [vmem:[#allocation2] sm:$0xf]
        %v1386 = vld [vmem:[#allocation2 + $0x4] sm:$0xf]
        %v1387 = vld [vmem:[#allocation2 + $0x8] sm:$0xf]
        %v1388 = vld [vmem:[#allocation2 + $0xc] sm:$0xf]
        %v1389 = vld [vmem:[#allocation2 + $0x10] sm:$0xf]
        %v1390 = vld [vmem:[#allocation2 + $0x14] sm:$0xf]
        %v1391 = vld [vmem:[#allocation2 + $0x18] sm:$0xf]
        %v1392 = vld [vmem:[#allocation2 + $0x1c] sm:$0xf]
        %v1393 = vld [vmem:[#allocation2 + $0x20] sm:$0xf]
        %v1394 = vld [vmem:[#allocation2 + $0x24] sm:$0xf]
        %v1395 = vld [vmem:[#allocation2 + $0x28] sm:$0xf]
        %v1396 = vld [vmem:[#allocation2 + $0x2c] sm:$0xf]
        %v1397 = vld [vmem:[#allocation2 + $0x30] sm:$0xf]
        %v1398 = vld [vmem:[#allocation2 + $0x34] sm:$0xf]
        %v1399 = vld [vmem:[#allocation2 + $0x38] sm:$0xf]
        %v1400 = vld [vmem:[#allocation2 + $0x3c] sm:$0xf]
        %v1401 = vld [vmem:[#allocation2 + $0x40] sm:$0xf]
        %v1402 = vld [vmem:[#allocation2 + $0x44] sm:$0xf]
        %v1403 = vld [vmem:[#allocation2 + $0x48] sm:$0xf]
        %v1404 = vld [vmem:[#allocation2 + $0x4c] sm:$0xf]
        %v1405 = vld [vmem:[#allocation2 + $0x50] sm:$0xf]
        %v1406 = vld [vmem:[#allocation2 + $0x54] sm:$0xf]
        %v1407 = vld [vmem:[#allocation2 + $0x58] sm:$0xf]
        %v1408 = vld [vmem:[#allocation2 + $0x5c] sm:$0xf]
        %v1409 = vld [vmem:[#allocation2 + $0x60] sm:$0xf]
        %v1410 = vld [vmem:[#allocation2 + $0x64] sm:$0xf]
        %v1411 = vld [vmem:[#allocation2 + $0x68] sm:$0xf]
        %v1412 = vld [vmem:[#allocation2 + $0x6c] sm:$0xf]
        %v1413 = vld [vmem:[#allocation2 + $0x70] sm:$0xf]
        %v1414 = vld [vmem:[#allocation2 + $0x74] sm:$0xf]
        %v1415 = vld [vmem:[#allocation2 + $0x78] sm:$0xf]
        %v1416 = vld [vmem:[#allocation2 + $0x7c] sm:$0xf]
        %v1417 = vld [vmem:[#allocation2 + $0x80] sm:$0xf]
        %v1418 = vld [vmem:[#allocation2 + $0x84] sm:$0xf]
        %v1419 = vld [vmem:[#allocation2 + $0x88] sm:$0xf]
        %v1420 = vld [vmem:[#allocation2 + $0x8c] sm:$0xf]
        %v1421 = vld [vmem:[#allocation2 + $0x90] sm:$0xf]
        %v1422 = vld [vmem:[#allocation2 + $0x94] sm:$0xf]
        %v1423 = vld [vmem:[#allocation2 + $0x98] sm:$0xf]
        %v1424 = vld [vmem:[#allocation2 + $0x9c] sm:$0xf]
        %v1425 = vld [vmem:[#allocation2 + $0xa0] sm:$0xf]
        %v1426 = vld [vmem:[#allocation2 + $0xa4] sm:$0xf]
        %v1427 = vld [vmem:[#allocation2 + $0xa8] sm:$0xf]
        %v1428 = vld [vmem:[#allocation2 + $0xac] sm:$0xf]
        %v1429 = vld [vmem:[#allocation2 + $0xb0] sm:$0xf]
        %v1430 = vld [vmem:[#allocation2 + $0xb4] sm:$0xf]
        %v1431 = vld [vmem:[#allocation2 + $0xb8] sm:$0xf]
        %v1432 = vld [vmem:[#allocation2 + $0xbc] sm:$0xf]
        %v1433 = vld [vmem:[#allocation2 + $0xc0] sm:$0xf]
        %v1434 = vld [vmem:[#allocation2 + $0xc4] sm:$0xf]
        %v1435 = vld [vmem:[#allocation2 + $0xc8] sm:$0xf]
        %v1436 = vld [vmem:[#allocation2 + $0xcc] sm:$0xf]
        %v1437 = vld [vmem:[#allocation2 + $0xd0] sm:$0xf]
        %v1438 = vld [vmem:[#allocation2 + $0xd4] sm:$0xf]
        %v1439 = vld [vmem:[#allocation2 + $0xd8] sm:$0xf]
        %v1440 = vld [vmem:[#allocation2 + $0xdc] sm:$0xf]
        %v1441 = vld [vmem:[#allocation2 + $0xe0] sm:$0xf]
        %v1442 = vld [vmem:[#allocation2 + $0xe4] sm:$0xf]
        %v1443 = vld [vmem:[#allocation2 + $0xe8] sm:$0xf]
        %v1444 = vld [vmem:[#allocation2 + $0xec] sm:$0xf]
        %v1445 = vld [vmem:[#allocation2 + $0xf0] sm:$0xf]
        %v1446 = vld [vmem:[#allocation2 + $0xf4] sm:$0xf]
        %v1447 = vld [vmem:[#allocation2 + $0xf8] sm:$0xf]
        %v1448 = vld [vmem:[#allocation2 + $0xfc] sm:$0xf]
        %v1449 = vld [vmem:[#allocation2 + $0x100] sm:$0xf]
        %v1450 = vld [vmem:[#allocation2 + $0x104] sm:$0xf]
        %v1451 = vld [vmem:[#allocation2 + $0x108] sm:$0xf]
        %v1452 = vld [vmem:[#allocation2 + $0x10c] sm:$0xf]
        %v1453 = vld [vmem:[#allocation2 + $0x110] sm:$0xf]
        %v1454 = vld [vmem:[#allocation2 + $0x114] sm:$0xf]
        %v1455 = vld [vmem:[#allocation2 + $0x118] sm:$0xf]
        %v1456 = vld [vmem:[#allocation2 + $0x11c] sm:$0xf]
        %v1457 = vld [vmem:[%s14] sm:$0x1]
        %v1459 = vlaneseq
        %v1460 = vshrl.u32 %v1459, 7
        %v1461 = vsub.s32 0, %v1460
        %v1462 = vrot.slane %v1457, %v1461
        %v1536 = vunpack.c.l.b16 %v1385
        %v1537 = vunpack.c.l.b16 %v1386
        %v1538 = vunpack.c.l.b16 %v1387
        %v1539 = vunpack.c.l.b16 %v1388
        %v1540 = vunpack.c.l.b16 %v1389
        %v1541 = vunpack.c.l.b16 %v1390
        %v1542 = vunpack.c.l.b16 %v1391
        %v1543 = vunpack.c.l.b16 %v1392
        %v1544 = vunpack.c.l.b16 %v1393
        %v1545 = vunpack.c.l.b16 %v1394
        %v1546 = vunpack.c.l.b16 %v1395
        %v1547 = vunpack.c.l.b16 %v1396
        %v1548 = vunpack.c.l.b16 %v1397
        %v1549 = vunpack.c.l.b16 %v1398
        %v1550 = vunpack.c.l.b16 %v1399
        %v1551 = vunpack.c.l.b16 %v1400
        %v1552 = vunpack.c.l.b16 %v1401
        %v1553 = vunpack.c.l.b16 %v1402
        %v1554 = vunpack.c.l.b16 %v1403
        %v1555 = vunpack.c.l.b16 %v1404
        %v1556 = vunpack.c.l.b16 %v1405
        %v1557 = vunpack.c.l.b16 %v1406
        %v1558 = vunpack.c.l.b16 %v1407
        %v1559 = vunpack.c.l.b16 %v1408
        %v1560 = vunpack.c.l.b16 %v1409
        %v1561 = vunpack.c.l.b16 %v1410
        %v1562 = vunpack.c.l.b16 %v1411
        %v1563 = vunpack.c.l.b16 %v1412
        %v1564 = vunpack.c.l.b16 %v1413
        %v1565 = vunpack.c.l.b16 %v1414
        %v1566 = vunpack.c.l.b16 %v1415
        %v1567 = vunpack.c.l.b16 %v1416
        %v1568 = vunpack.c.l.b16 %v1417
        %v1569 = vunpack.c.l.b16 %v1418
        %v1570 = vunpack.c.l.b16 %v1419
        %v1571 = vunpack.c.l.b16 %v1420
        %v1572 = vunpack.c.l.b16 %v1421
        %v1573 = vunpack.c.l.b16 %v1422
        %v1574 = vunpack.c.l.b16 %v1423
        %v1575 = vunpack.c.l.b16 %v1424
        %v1576 = vunpack.c.l.b16 %v1425
        %v1577 = vunpack.c.l.b16 %v1426
        %v1578 = vunpack.c.l.b16 %v1427
        %v1579 = vunpack.c.l.b16 %v1428
        %v1580 = vunpack.c.l.b16 %v1429
        %v1581 = vunpack.c.l.b16 %v1430
        %v1582 = vunpack.c.l.b16 %v1431
        %v1583 = vunpack.c.l.b16 %v1432
        %v1584 = vunpack.c.l.b16 %v1433
        %v1585 = vunpack.c.l.b16 %v1434
        %v1586 = vunpack.c.l.b16 %v1435
        %v1587 = vunpack.c.l.b16 %v1436
        %v1588 = vunpack.c.l.b16 %v1437
        %v1589 = vunpack.c.l.b16 %v1438
        %v1590 = vunpack.c.l.b16 %v1439
        %v1591 = vunpack.c.l.b16 %v1440
        %v1592 = vunpack.c.l.b16 %v1441
        %v1593 = vunpack.c.l.b16 %v1442
        %v1594 = vunpack.c.l.b16 %v1443
        %v1595 = vunpack.c.l.b16 %v1444
        %v1596 = vunpack.c.l.b16 %v1445
        %v1597 = vunpack.c.l.b16 %v1446
        %v1598 = vunpack.c.l.b16 %v1447
        %v1599 = vunpack.c.l.b16 %v1448
        %v1600 = vunpack.c.l.b16 %v1449
        %v1601 = vunpack.c.l.b16 %v1450
        %v1602 = vunpack.c.l.b16 %v1451
        %v1603 = vunpack.c.l.b16 %v1452
        %v1604 = vunpack.c.l.b16 %v1453
        %v1605 = vunpack.c.l.b16 %v1454
        %v1606 = vunpack.c.l.b16 %v1455
        %v1607 = vunpack.c.l.b16 %v1456
        %v1608 = vpack.c.b16 %v1537, %v1536
        %v1609 = vpack.c.b16 %v1539, %v1538
        %v1610 = vpack.c.b16 %v1541, %v1540
        %v1611 = vpack.c.b16 %v1543, %v1542
        %v1612 = vpack.c.b16 %v1545, %v1544
        %v1613 = vpack.c.b16 %v1547, %v1546
        %v1614 = vpack.c.b16 %v1549, %v1548
        %v1615 = vpack.c.b16 %v1551, %v1550
        %v1616 = vpack.c.b16 %v1553, %v1552
        %v1617 = vpack.c.b16 %v1555, %v1554
        %v1618 = vpack.c.b16 %v1557, %v1556
        %v1619 = vpack.c.b16 %v1559, %v1558
        %v1620 = vpack.c.b16 %v1561, %v1560
        %v1621 = vpack.c.b16 %v1563, %v1562
        %v1622 = vpack.c.b16 %v1565, %v1564
        %v1623 = vpack.c.b16 %v1567, %v1566
        %v1624 = vpack.c.b16 %v1569, %v1568
        %v1625 = vpack.c.b16 %v1571, %v1570
        %v1626 = vpack.c.b16 %v1573, %v1572
        %v1627 = vpack.c.b16 %v1575, %v1574
        %v1628 = vpack.c.b16 %v1577, %v1576
        %v1629 = vpack.c.b16 %v1579, %v1578
        %v1630 = vpack.c.b16 %v1581, %v1580
        %v1631 = vpack.c.b16 %v1583, %v1582
        %v1632 = vpack.c.b16 %v1585, %v1584
        %v1633 = vpack.c.b16 %v1587, %v1586
        %v1634 = vpack.c.b16 %v1589, %v1588
        %v1635 = vpack.c.b16 %v1591, %v1590
        %v1636 = vpack.c.b16 %v1593, %v1592
        %v1637 = vpack.c.b16 %v1595, %v1594
        %v1638 = vpack.c.b16 %v1597, %v1596
        %v1639 = vpack.c.b16 %v1599, %v1598
        %v1640 = vpack.c.b16 %v1601, %v1600
        %v1641 = vpack.c.b16 %v1603, %v1602
        %v1642 = vpack.c.b16 %v1605, %v1604
        %v1643 = vpack.c.b16 %v1607, %v1606
        %v1681 = vsel %vm1369, %v1384, 0
        %1683 = vmatprep.subr.bf16.mxu0 0
        %1684 = vmatpush1.bf16.msra.mxu0 %v1615
        %1685 = vmatprep.subr.bf16.mxu0 0
        %1686 = vmatpush1.bf16.msra.mxu0 %v1614
        %1687 = vmatprep.subr.bf16.mxu0 0
        %1688 = vmatpush1.bf16.msra.mxu0 %v1613
        %1689 = vmatprep.subr.bf16.mxu0 0
        %1690 = vmatpush1.bf16.msra.mxu0 %v1612
        %1691 = vmatprep.subr.bf16.mxu0 0
        %1692 = vmatpush1.bf16.msra.mxu0 %v1611
        %1693 = vmatprep.subr.bf16.mxu0 0
        %1694 = vmatpush1.bf16.msra.mxu0 %v1610
        %1695 = vmatprep.subr.bf16.mxu0 0
        %1696 = vmatpush1.bf16.msra.mxu0 %v1609
        %1697 = vmatprep.subr.bf16.mxu0 0
        %1698 = vmatpush1.bf16.msra.mxu0 %v1608
        %1699 = vmatprep.subr.bf16.mxu0 0
        %1700 = vmatpush2.bf16.msra.mxu0 %v1623
        %1701 = vmatprep.subr.bf16.mxu0 0
        %1702 = vmatpush2.bf16.msra.mxu0 %v1622
        %1703 = vmatprep.subr.bf16.mxu0 0
        %1704 = vmatpush2.bf16.msra.mxu0 %v1621
        %1705 = vmatprep.subr.bf16.mxu0 0
        %1706 = vmatpush2.bf16.msra.mxu0 %v1620
        %1707 = vmatprep.subr.bf16.mxu0 0
        %1708 = vmatpush2.bf16.msra.mxu0 %v1619
        %1709 = vmatprep.subr.bf16.mxu0 0
        %1710 = vmatpush2.bf16.msra.mxu0 %v1618
        %1711 = vmatprep.subr.bf16.mxu0 0
        %1712 = vmatpush2.bf16.msra.mxu0 %v1617
        %1713 = vmatprep.subr.bf16.mxu0 0
        %1714 = vmatpush2.bf16.msra.mxu0 %v1616
        %1715 = vmatprep.mubr.bf16.mxu0 %v1381
        %1716 = vmatmul.mubr.bf16.gmra.mxu0 %v1380
        %v1717 = vpop.f32.mrf.mxu0
        %v1718 = vadd.f32 %v1462, %v1717
        %v1719 = vpop.f32.mrf.mxu0
        %v1720 = vpop.f32.mrf.mxu0
        %v1721 = vpop.f32.mrf.mxu0
        %1722 = vdwg.mxu0
        %1723 = vmatprep.subr.bf16.mxu0 0
        %1724 = vmatpush1.bf16.msra.mxu0 %v1631
        %1725 = vmatprep.subr.bf16.mxu0 0
        %1726 = vmatpush1.bf16.msra.mxu0 %v1630
        %1727 = vmatprep.subr.bf16.mxu0 0
        %1728 = vmatpush1.bf16.msra.mxu0 %v1629
        %1729 = vmatprep.subr.bf16.mxu0 0
        %1730 = vmatpush1.bf16.msra.mxu0 %v1628
        %1731 = vmatprep.subr.bf16.mxu0 0
        %1732 = vmatpush1.bf16.msra.mxu0 %v1627
        %1733 = vmatprep.subr.bf16.mxu0 0
        %1734 = vmatpush1.bf16.msra.mxu0 %v1626
        %1735 = vmatprep.subr.bf16.mxu0 0
        %1736 = vmatpush1.bf16.msra.mxu0 %v1625
        %1737 = vmatprep.subr.bf16.mxu0 0
        %1738 = vmatpush1.bf16.msra.mxu0 %v1624
        %1739 = vmatprep.subr.bf16.mxu0 0
        %1740 = vmatpush2.bf16.msra.mxu0 %v1639
        %1741 = vmatprep.subr.bf16.mxu0 0
        %1742 = vmatpush2.bf16.msra.mxu0 %v1638
        %1743 = vmatprep.subr.bf16.mxu0 0
        %1744 = vmatpush2.bf16.msra.mxu0 %v1637
        %1745 = vmatprep.subr.bf16.mxu0 0
        %1746 = vmatpush2.bf16.msra.mxu0 %v1636
        %1747 = vmatprep.subr.bf16.mxu0 0
        %1748 = vmatpush2.bf16.msra.mxu0 %v1635
        %1749 = vmatprep.subr.bf16.mxu0 0
        %1750 = vmatpush2.bf16.msra.mxu0 %v1634
        %1751 = vmatprep.subr.bf16.mxu0 0
        %1752 = vmatpush2.bf16.msra.mxu0 %v1633
        %1753 = vmatprep.subr.bf16.mxu0 0
        %1754 = vmatpush2.bf16.msra.mxu0 %v1632
        %1755 = vmatprep.mubr.bf16.mxu0 %v1383
        %1756 = vmatmul.mubr.bf16.gmra.mxu0 %v1382
        %v1757 = vpop.f32.mrf.mxu0
        %v1758 = vadd.f32 %v1718, %v1757
        %v1759 = vpop.f32.mrf.mxu0
        %v1760 = vpop.f32.mrf.mxu0
        %v1761 = vpop.f32.mrf.mxu0
        %1762 = vdwg.mxu0
        %1763 = vmatprep.subr.bf16.mxu0 0
        %1764 = vmatpush1.bf16.msra.mxu0 0
        %1765 = vmatprep.subr.bf16.mxu0 0
        %1766 = vmatpush1.bf16.msra.mxu0 0
        %1767 = vmatprep.subr.bf16.mxu0 0
        %1768 = vmatpush1.bf16.msra.mxu0 0
        %1769 = vmatprep.subr.bf16.mxu0 0
        %1770 = vmatpush1.bf16.msra.mxu0 0
        %1771 = vmatprep.subr.bf16.mxu0 0
        %1772 = vmatpush1.bf16.msra.mxu0 %v1643
        %1773 = vmatprep.subr.bf16.mxu0 0
        %1774 = vmatpush1.bf16.msra.mxu0 %v1642
        %1775 = vmatprep.subr.bf16.mxu0 0
        %1776 = vmatpush1.bf16.msra.mxu0 %v1641
        %1777 = vmatprep.subr.bf16.mxu0 0
        %1778 = vmatpush1.bf16.msra.mxu0 %v1640
        %1779 = vmatprep.subr.bf16.mxu0 0
        %1780 = vmatpush2.bf16.msra.mxu0 0
        %1781 = vmatprep.subr.bf16.mxu0 0
        %1782 = vmatpush2.bf16.msra.mxu0 0
        %1783 = vmatprep.subr.bf16.mxu0 0
        %1784 = vmatpush2.bf16.msra.mxu0 0
        %1785 = vmatprep.subr.bf16.mxu0 0
        %1786 = vmatpush2.bf16.msra.mxu0 0
        %1787 = vmatprep.subr.bf16.mxu0 0
        %1788 = vmatpush2.bf16.msra.mxu0 0
        %1789 = vmatprep.subr.bf16.mxu0 0
        %1790 = vmatpush2.bf16.msra.mxu0 0
        %1791 = vmatprep.subr.bf16.mxu0 0
        %1792 = vmatpush2.bf16.msra.mxu0 0
        %1793 = vmatprep.subr.bf16.mxu0 0
        %1794 = vmatpush2.bf16.msra.mxu0 0
        %1795 = vmatprep.mubr.bf16.mxu0 0
        %1796 = vmatmul.mubr.bf16.gmra.mxu0 %v1681
        %v1797 = vpop.f32.mrf.mxu0
        %v1798 = vadd.f32 %v1758, %v1797
        %v1799 = vpop.f32.mrf.mxu0
        %v1800 = vpop.f32.mrf.mxu0
        %v1801 = vpop.f32.mrf.mxu0
        %1802 = vdwg.mxu0
        %v1803 = vlaneseq
        %v1804 = vshrl.u32 %v1803, 7
        %v1805 = vsub.s32 0, %v1804
        %v1806 = vrot.slane %v1216, %v1805
        %v1807 = vmul.f32 %v1798, %v1806
        %v1808 = vlaneseq
        %v1809 = vshrl.u32 %v1808, 7
        %v1810 = vsub.s32 0, %v1809
        %v1811 = vrot.slane %v1218, %v1810
        %v1812 = vadd.f32 %v1807, %v1811
        %v1813 = vmul.f32 %v1812, %v1812
        %v1814 = vmul.f32 %v1812, %v1813
        %v1815 = vmul.f32 %v1814, 0.044715
        %v1816 = vadd.f32 %v1812, %v1815
        %v1817 = vmul.f32 %v1816, 0.7978846
        %v1818 = vtanh.pop %v1817
        %v1819 = vadd.f32 %v1818, 1.0
        %v1820 = vmul.f32 %v1819, 0.5
        %v1821 = vmul.f32 %v1812, %v1820
        %1822 = vst [vmem:[%s626] sm:$0xf] %v1821
        %v1824 = vrot.slane %v1821, 7
        %1825 = vrot.lane.b32.xlu0 %v1824, 64
        %v1826 = vpop.permute.xlu0 %1825
        %v1829 = vrot.slane %v1821, 6
        %1830 = vrot.lane.b32.xlu0 %v1829, 64
        %v1831 = vpop.permute.xlu0 %1830
        %v1834 = vrot.slane %v1821, 5
        %1835 = vrot.lane.b32.xlu0 %v1834, 64
        %v1836 = vpop.permute.xlu0 %1835
        %v1839 = vrot.slane %v1821, 4
        %1840 = vrot.lane.b32.xlu0 %v1839, 64
        %v1841 = vpop.permute.xlu0 %1840
        %v1843 = vsel %vm633, %v1821, %v1826
        %v1844 = vsel %vm1228, %v1843, %v1824
        %v1845 = vsel %vm1329, %v1844, %v1831
        %v1846 = vsel %vm1374, %v1845, %v1829
        %v1847 = vsel %vm1342, %v1846, %v1836
        %vm1848 = vcmask 1045504
        %v1849 = vsel %vm1848, %v1847, %v1834
        %vm1850 = vcmask 1046528
        %v1851 = vsel %vm1850, %v1849, %v1841
        %v1852 = vpack.c.bf16 0.0, %v1851
        %v1853 = vld [vmem:[%s15] sm:$0xf]
        %v1854 = vld [vmem:[%s15 + $0x4] sm:$0xf]
        %v1855 = vld [vmem:[%s15 + $0x8] sm:$0xf]
        %v1856 = vld [vmem:[%s15 + $0xc] sm:$0xf]
        %v1857 = vld [vmem:[%s15 + $0x10] sm:$0xf]
        %v1858 = vld [vmem:[%s15 + $0x14] sm:$0xf]
        %v1859 = vld [vmem:[%s15 + $0x18] sm:$0xf]
        %v1860 = vld [vmem:[%s15 + $0x1c] sm:$0xf]
        %v1861 = vld [vmem:[%s16] sm:$0x1]
        %v1863 = vlaneseq
        %v1864 = vshrl.u32 %v1863, 7
        %v1865 = vsub.s32 0, %v1864
        %v1866 = vrot.slane %v1861, %v1865
        %v1876 = vunpack.c.l.b16 %v1853
        %v1877 = vunpack.c.l.b16 %v1854
        %v1878 = vunpack.c.l.b16 %v1855
        %v1879 = vunpack.c.l.b16 %v1856
        %v1880 = vunpack.c.l.b16 %v1857
        %v1881 = vunpack.c.l.b16 %v1858
        %v1882 = vunpack.c.l.b16 %v1859
        %v1883 = vunpack.c.l.b16 %v1860
        %v1884 = vpack.c.b16 %v1877, %v1876
        %v1885 = vpack.c.b16 %v1879, %v1878
        %v1886 = vpack.c.b16 %v1881, %v1880
        %v1887 = vpack.c.b16 %v1883, %v1882
        %v1893 = vsel %vm1369, %v1852, 0
        %1895 = vmatprep.subr.bf16.mxu0 0
        %1896 = vmatpush1.bf16.msra.mxu0 0
        %1897 = vmatprep.subr.bf16.mxu0 0
        %1898 = vmatpush1.bf16.msra.mxu0 0
        %1899 = vmatprep.subr.bf16.mxu0 0
        %1900 = vmatpush1.bf16.msra.mxu0 0
        %1901 = vmatprep.subr.bf16.mxu0 0
        %1902 = vmatpush1.bf16.msra.mxu0 0
        %1903 = vmatprep.subr.bf16.mxu0 0
        %1904 = vmatpush1.bf16.msra.mxu0 %v1887
        %1905 = vmatprep.subr.bf16.mxu0 0
        %1906 = vmatpush1.bf16.msra.mxu0 %v1886
        %1907 = vmatprep.subr.bf16.mxu0 0
        %1908 = vmatpush1.bf16.msra.mxu0 %v1885
        %1909 = vmatprep.subr.bf16.mxu0 0
        %1910 = vmatpush1.bf16.msra.mxu0 %v1884
        %1911 = vmatprep.subr.bf16.mxu0 0
        %1912 = vmatpush2.bf16.msra.mxu0 0
        %1913 = vmatprep.subr.bf16.mxu0 0
        %1914 = vmatpush2.bf16.msra.mxu0 0
        %1915 = vmatprep.subr.bf16.mxu0 0
        %1916 = vmatpush2.bf16.msra.mxu0 0
        %1917 = vmatprep.subr.bf16.mxu0 0
        %1918 = vmatpush2.bf16.msra.mxu0 0
        %1919 = vmatprep.subr.bf16.mxu0 0
        %1920 = vmatpush2.bf16.msra.mxu0 0
        %1921 = vmatprep.subr.bf16.mxu0 0
        %1922 = vmatpush2.bf16.msra.mxu0 0
        %1923 = vmatprep.subr.bf16.mxu0 0
        %1924 = vmatpush2.bf16.msra.mxu0 0
        %1925 = vmatprep.subr.bf16.mxu0 0
        %1926 = vmatpush2.bf16.msra.mxu0 0
        %1927 = vmatprep.mubr.bf16.mxu0 0
        %1928 = vmatmul.mubr.bf16.gmra.mxu0 %v1893
        %v1929 = vpop.f32.mrf.mxu0
        %v1930 = vadd.f32 %v1866, %v1929
        %v1931 = vpop.f32.mrf.mxu0
        %v1932 = vpop.f32.mrf.mxu0
        %v1933 = vpop.f32.mrf.mxu0
        %1934 = vdwg.mxu0
        %v1935 = vtanh.pop %v1930
        %v1936 = vmul.f32 %v1935, 0.5
        %v1937 = vadd.f32 %v1936, 0.5
        %1938 = vst [vmem:[%s630] sm:$0xff] %v1937
        %p1939 = scmp.lt.s32.totalorder %s32, 1
        %s1940 = scalar_select %p1939, %s32, 1
        %s1941 = smul.addr %s1940, 2
        %s1942 = scalar_lea.vmem %s17, %s1941
        %p1943 = scmp.lt.s32.totalorder %s32, 1
        %s1944 = scalar_select %p1943, %s32, 1
        %s1945 = smul.addr %s1944, 4
        %s1946 = scalar_lea.vmem %s18, %s1945
        %p1947 = scmp.lt.s32.totalorder %s32, 1
        %s1948 = scalar_select %p1947, %s32, 1
        %s1949 = smul.addr %s1948, 8
        %s1950 = scalar_lea.vmem %s19, %s1949
        // Predicated region
        $region93: #{forward.1} parent=87 // pred_check
          %p1951 = pneg %p412
        $region94: #{forward.1} parent=87 // pred_check_branch
          %1953 = sbr.rel (%p1951) target = $region96
        $region95: #{forward.1} parent=87 // pred_region
          _
        $region96: #{forward.1} parent=87 // pred_fallthru
          _
        // Predicated region
        $region97: #{forward.1} parent=87 // pred_check
          %p1954 = pneg %p438
        $region98: #{forward.1} parent=87 // pred_check_branch
          %1956 = sbr.rel (%p1954) target = $region100
        $region99: #{forward.1} parent=87 // pred_region
          _
        $region100: #{forward.1} parent=87 // pred_fallthru
          _
        // Predicated region
        $region101: #{forward.1} parent=87 // pred_check
          %p1957 = pneg %p464
        $region102: #{forward.1} parent=87 // pred_check_branch
          %1959 = sbr.rel (%p1957) target = $region104
        $region103: #{forward.1} parent=87 // pred_region
          _
        $region104: #{forward.1} parent=87 // pred_fallthru
          _
      $region88: #{forward.1} parent=5 // pred_fallthru
        _
      %p1960 = scmp.le.s32.totalorder 2, %s27
      // Predicated region
      $region105: #{forward.1} parent=5 // pred_check
        %p1961 = pneg %p1960
      $region106: #{forward.1} parent=5 // pred_check_branch
        %1963 = sbr.rel (%p1961) target = $region108
      $region107: #{forward.1} parent=5 // pred_region
        %s1964 = ssub.s32 %s27, 2
        // Predicated region
        $region109: #{forward.1} parent=107 // pred_check
          %p1965 = pneg %p418
        $region110: #{forward.1} parent=107 // pred_check_branch
          %1967 = sbr.rel (%p1965) target = $region112
        $region111: #{forward.1} parent=107 // pred_region
          %p1968 = scmp.lt.s32.totalorder %s33, 1
          %s1969 = scalar_select %p1968, %s33, 1
          %s1970 = smul.addr %s1969, 2
          %s1971 = scalar_lea.vmem %s17, %s1970
        $region112: #{forward.1} parent=107 // pred_fallthru
          _
        // Predicated region
        $region113: #{forward.1} parent=107 // pred_check
          %p1972 = pneg %p444
        $region114: #{forward.1} parent=107 // pred_check_branch
          %1974 = sbr.rel (%p1972) target = $region116
        $region115: #{forward.1} parent=107 // pred_region
          %p1975 = scmp.lt.s32.totalorder %s33, 1
          %s1976 = scalar_select %p1975, %s33, 1
          %s1977 = smul.addr %s1976, 4
          %s1978 = scalar_lea.vmem %s18, %s1977
        $region116: #{forward.1} parent=107 // pred_fallthru
          _
        // Predicated region
        $region117: #{forward.1} parent=107 // pred_check
          %p1979 = pneg %p470
        $region118: #{forward.1} parent=107 // pred_check_branch
          %1981 = sbr.rel (%p1979) target = $region120
        $region119: #{forward.1} parent=107 // pred_region
          %p1982 = scmp.lt.s32.totalorder %s33, 1
          %s1983 = scalar_select %p1982, %s33, 1
          %s1984 = smul.addr %s1983, 8
          %s1985 = scalar_lea.vmem %s19, %s1984
        $region120: #{forward.1} parent=107 // pred_fallthru
          _
      $region108: #{forward.1} parent=5 // pred_fallthru
        _
    $region6: #{forward.1} parent=1 // loop_footer
      %s31 = sadd.s32 1, %s27
    $region7: #{forward.1} parent=1 // loop_footer_branch
      %26 = sbr.rel target = $region3
    $region8: #{forward.1} parent=1 // loop_exit
      _
    %1986 = vsyncpa [#allocation3], 1
    %s1987 = scalar_lea.sflag [#allocation3], 1
    %1988 = vsyncpa %s1987, 1

</llo_original>
